<compile_context>
chip_gen: v6e
topology: v6e:2x2x1
jax: 0.10.0
libtpu: 0.0.40
codegen_flags: <defaults>
</compile_context>

<pallas_src>
import functools

import jax
import jax.numpy as jnp
from jax.experimental import pallas as pl
from jax.experimental.pallas import tpu as pltpu


def _round_up(x, m):
    return (x + m - 1) // m * m


# ---------------------------------------------------------------------------
# Shared attention body: softmax + context + output projection + residual +
# LayerNorm.  qp/kp/vp are already-projected f32 2-D activations.
# ---------------------------------------------------------------------------
def _attn_core(qp, kp, vp, resid, wf_ref, gamma_ref, beta_ref,
               out_ref, attn_ref, *, bt, lq, lk, lk_real, d_model, eps):
    dkp = qp.shape[-1]
    dvp = vp.shape[-1]

    # Free reshapes: lq is a multiple of 16, lk a multiple of 128.
    q3 = qp.reshape(bt, lq, dkp).astype(jnp.bfloat16)
    k3 = kp.reshape(bt, lk, dkp).astype(jnp.bfloat16)
    v3 = vp.reshape(bt, lk, dvp).astype(jnp.bfloat16)

    # Scaled dot-product scores (1/temperature already folded into w_qs).
    scores = jnp.einsum('bqd,bkd->bqk', q3, k3,
                        preferred_element_type=jnp.float32)        # (bt, lq, lk) f32
    if lk_real != lk:
        # Mask padded keys so they get exactly zero probability.
        key_idx = jax.lax.broadcasted_iota(jnp.int32, (1, 1, lk), 2)
        scores = jnp.where(key_idx < lk_real, scores, -1e30)

    m = jnp.max(scores, axis=-1, keepdims=True)
    e = jnp.exp(scores - m)
    denom = jnp.sum(e, axis=-1, keepdims=True)
    attn = e / denom                                               # exact probabilities
    attn_ref[...] = attn.reshape(bt * lq, lk).astype(attn_ref.dtype)

    attn_bf = attn.astype(jnp.bfloat16)                            # single cast, reused
    ctx = jnp.einsum('bqk,bkd->bqd', attn_bf, v3,
                     preferred_element_type=jnp.float32)           # (bt, lq, dvp)

    proj = jnp.dot(ctx.reshape(bt * lq, dvp).astype(jnp.bfloat16), wf_ref[...],
                   preferred_element_type=jnp.float32)             # (bt*lq, Dp)
    y = proj + resid                                               # residual

    # LayerNorm over the real d_model features.  Padded columns of y are
    # exactly zero (zero-padded weights / inputs / residual), so no masking:
    # mean = sum(y)/d_model and var = E[y^2] - mean^2 are exact.
    inv_n = 1.0 / float(d_model)
    mean = jnp.sum(y, axis=-1, keepdims=True) * inv_n
    var = jnp.sum(y * y, axis=-1, keepdims=True) * inv_n - mean * mean
    y_norm = (y - mean) * jax.lax.rsqrt(var + eps)
    out_ref[...] = (y_norm * gamma_ref[...] + beta_ref[...]).astype(out_ref.dtype)


def _selfattn_kernel(q_ref, k_ref, v_ref, wq_ref, wk_ref, wv_ref, wf_ref,
                     gamma_ref, beta_ref, out_ref, attn_ref,
                     *, bt, lq, lk, lk_real, d_model, eps):
    q2 = q_ref[...]                                                # (bt*lq, Dp) bf16
    k2 = k_ref[...]                                                # (bt*lk, Dp) bf16
    v2 = v_ref[...]                                                # (bt*lk, Dp) bf16
    qp = jnp.dot(q2, wq_ref[...], preferred_element_type=jnp.float32)
    kp = jnp.dot(k2, wk_ref[...], preferred_element_type=jnp.float32)
    vp = jnp.dot(v2, wv_ref[...], preferred_element_type=jnp.float32)
    _attn_core(qp, kp, vp, q2.astype(jnp.float32), wf_ref, gamma_ref, beta_ref,
               out_ref, attn_ref, bt=bt, lq=lq, lk=lk, lk_real=lk_real,
               d_model=d_model, eps=eps)


def _selfattn_fused_kernel(x_ref, wqkv_ref, wf_ref, gamma_ref, beta_ref,
                           out_ref, attn_ref,
                           *, bt, lq, lk_real, d_model, eps, dkp, dvp):
    # q == k == v: one matmul with N = 2*Dkp + Dvp fills the wide MXU.
    x2 = x_ref[...]                                                # (bt*lq, Dp) bf16
    qkv = jnp.dot(x2, wqkv_ref[...], preferred_element_type=jnp.float32)
    qp = qkv[:, :dkp]                                              # 128-aligned lane slices
    kp = qkv[:, dkp:2 * dkp]
    vp = qkv[:, 2 * dkp:2 * dkp + dvp]
    _attn_core(qp, kp, vp, x2.astype(jnp.float32), wf_ref, gamma_ref, beta_ref,
               out_ref, attn_ref, bt=bt, lq=lq, lk=lq, lk_real=lk_real,
               d_model=d_model, eps=eps)


def self_attention(q, k, v, params, d_k, d_v):
    """q, k, v: (B, L, d_model) float32.  Returns (out, attn)."""
    B, Lq, d_model = q.shape
    Lk = k.shape[1]
    temperature = float(d_k) ** 0.5
    fused = (q is k) and (k is v)

    # ---- layout prep (lane/sublane padding, wrapper-side, one-time) --------
    Dp = _round_up(d_model, 128)
    Dkp = _round_up(d_k, 128)
    Dvp = _round_up(d_v, 128)
    if fused:
        Lqp = Lkp = _round_up(Lq, 128)       # shared seq: lane-dense everywhere
    else:
        Lqp = _round_up(Lq, 16)              # bf16 sublane pack -> free reshapes
        Lkp = _round_up(Lk, 128)             # lane-dense scores / attn output

    def pad_act(x, rows, cols):
        pr, pc = rows - x.shape[1], cols - x.shape[2]
        if pr or pc:
            x = jnp.pad(x, ((0, 0), (0, pr), (0, pc)))
        # bf16 inputs halve DMA bytes; residual is taken from these in-kernel.
        return x.astype(jnp.bfloat16).reshape(x.shape[0] * rows, cols)

    def prep_w(w, in_p, out_p, scale=1.0):
        # nn.Linear weight (out, in) -> (in, out), zero-padded, bf16.
        wt = (w * scale).T
        wt = jnp.pad(wt, ((0, in_p - wt.shape[0]), (0, out_p - wt.shape[1])))
        return wt.astype(jnp.bfloat16)

    wq_t = prep_w(params["w_qs"], Dp, Dkp, scale=1.0 / temperature)
    wk_t = prep_w(params["w_ks"], Dp, Dkp)
    wv_t = prep_w(params["w_vs"], Dp, Dvp)
    wf_t = prep_w(params["fc"], Dvp, Dp)

    def pad_vec(x):
        return jnp.pad(x[None, :], ((0, 0), (0, Dp - x.shape[0]))).astype(jnp.float32)

    gamma = pad_vec(params["ln_gamma"])
    beta = pad_vec(params["ln_beta"])

    # ---- VMEM-budget-derived batch tile + explicit vmem limit --------------
    try:
        vmem_cap = int(pltpu.get_tpu_info().vmem_capacity_bytes)
    except Exception:
        vmem_cap = 64 * 1024 * 1024          # conservative (v7x-sized) fallback
    budget = min(vmem_cap // 2, 64 * 1024 * 1024)

    def est_vmem(bt):
        if fused:
            in_tiles = bt * Lqp * Dp * 2
            w_bytes = (Dp * (2 * Dkp + Dvp) + Dvp * Dp) * 2 + 2 * Dp * 4
        else:
            in_tiles = bt * (Lqp + 2 * Lkp) * Dp * 2
            w_bytes = (2 * Dp * Dkp + Dp * Dvp + Dvp * Dp) * 2 + 2 * Dp * 4
        out_tiles = bt * Lqp * (Dp + Lkp) * 4
        f32_interm = bt * (Lqp * Dkp + Lkp * (Dkp + Dvp) + 3 * Lqp * Lkp
                           + Lqp * Dvp + 2 * Lqp * Dp) * 4
        bf16_interm = bt * (Lqp * Dkp + Lkp * (Dkp + Dvp) + Lqp * Lkp
                            + Lqp * Dvp) * 2
        # Pipeline double-buffers inputs/outputs; weights also get two buffers.
        return 2 * (in_tiles + out_tiles) + 2 * w_bytes + f32_interm + bf16_interm

    # Keep >= 2 grid steps whenever possible so the second TensorCore on
    # megacore parts (v7x) gets work via dimension_semantics=("parallel",).
    max_bt = B if B == 1 else B // 2
    bt = 1
    for cand in range(max_bt, 0, -1):
        if B % cand == 0 and est_vmem(cand) <= budget:
            bt = cand
            break
    vmem_limit = int(min(max(budget, int(est_vmem(bt) * 1.25)),
                         vmem_cap - (4 << 20)))
    # TODO(synk): add a flash-style Lk grid axis (online softmax) once even
    # bt=1 exceeds the VMEM budget at long sequence lengths.

    grid = (B // bt,)
    compiler_params = pltpu.CompilerParams(
        dimension_semantics=("parallel",), vmem_limit_bytes=vmem_limit)

    def const_spec(shape):
        # TODO(synk): pipeline_mode=pl.Buffered(1) would halve resident weight
        # VMEM (constant index_map); omitted until verified on the target jax.
        return pl.BlockSpec(shape, lambda i: tuple(0 for _ in shape))

    out_shape = (jax.ShapeDtypeStruct((B * Lqp, Dp), jnp.float32),
                 jax.ShapeDtypeStruct((B * Lqp, Lkp), jnp.float32))
    out_specs = [pl.BlockSpec((bt * Lqp, Dp), lambda i: (i, 0)),
                 pl.BlockSpec((bt * Lqp, Lkp), lambda i: (i, 0))]

    if fused:
        x_p = pad_act(q, Lqp, Dp)
        wqkv_t = jnp.concatenate([wq_t, wk_t, wv_t], axis=1)       # (Dp, 2Dkp+Dvp)
        kernel = functools.partial(
            _selfattn_fused_kernel, bt=bt, lq=Lqp, lk_real=Lk,
            d_model=d_model, eps=1e-6, dkp=Dkp, dvp=Dvp)
        out2, attn2 = pl.pallas_call(
            kernel,
            out_shape=out_shape,
            grid_spec=pltpu.PrefetchScalarGridSpec(
                num_scalar_prefetch=0, grid=grid,
                in_specs=[
                    pl.BlockSpec((bt * Lqp, Dp), lambda i: (i, 0)),   # x
                    const_spec((Dp, 2 * Dkp + Dvp)),                  # [wq|wk|wv]^T
                    const_spec((Dvp, Dp)),                            # fc^T
                    const_spec((1, Dp)),                              # ln gamma
                    const_spec((1, Dp)),                              # ln beta
                ],
                out_specs=out_specs),
            compiler_params=compiler_params,
        )(x_p, wqkv_t, wf_t, gamma, beta)
    else:
        q_p = pad_act(q, Lqp, Dp)
        k_p = pad_act(k, Lkp, Dp)
        v_p = pad_act(v, Lkp, Dp)
        kernel = functools.partial(
            _selfattn_kernel, bt=bt, lq=Lqp, lk=Lkp, lk_real=Lk,
            d_model=d_model, eps=1e-6)
        out2, attn2 = pl.pallas_call(
            kernel,
            out_shape=out_shape,
            grid_spec=pltpu.PrefetchScalarGridSpec(
                num_scalar_prefetch=0, grid=grid,
                in_specs=[
                    pl.BlockSpec((bt * Lqp, Dp), lambda i: (i, 0)),   # q (2-D)
                    pl.BlockSpec((bt * Lkp, Dp), lambda i: (i, 0)),   # k (2-D)
                    pl.BlockSpec((bt * Lkp, Dp), lambda i: (i, 0)),   # v (2-D)
                    const_spec((Dp, Dkp)),                            # w_qs^T (scaled)
                    const_spec((Dp, Dkp)),                            # w_ks^T
                    const_spec((Dp, Dvp)),                            # w_vs^T
                    const_spec((Dvp, Dp)),                            # fc^T
                    const_spec((1, Dp)),                              # ln gamma
                    const_spec((1, Dp)),                              # ln beta
                ],
                out_specs=out_specs),
            compiler_params=compiler_params,
        )(q_p, k_p, v_p, wq_t, wk_t, wv_t, wf_t, gamma, beta)

    out3 = out2.reshape(B, Lqp, Dp)
    attn3 = attn2.reshape(B, Lqp, Lkp)
    # Skip the (extra HBM pass) slice entirely when no padding was needed.
    out = out3 if (Lqp == Lq and Dp == d_model) else out3[:, :Lq, :d_model]
    attn = attn3 if (Lqp == Lq and Lkp == Lk) else attn3[:, :Lq, :Lk]
    return out, attn[:, None, :, :]


def init_params(key, d_model, d_k, d_v):
    k1, k2, k3, k4 = jax.random.split(key, 4)

    def lin(k, out_f, in_f):
        # nn.Linear default init: U(-1/sqrt(in_f), 1/sqrt(in_f)), shape (out, in)
        bound = 1.0 / (in_f ** 0.5)
        return jax.random.uniform(k, (out_f, in_f), jnp.float32, -bound, bound)

    return {
        "w_qs": lin(k1, d_k, d_model),
        "w_ks": lin(k2, d_k, d_model),
        "w_vs": lin(k3, d_v, d_model),
        "fc":   lin(k4, d_model, d_v),
        "ln_gamma": jnp.ones((d_model,), jnp.float32),
        "ln_beta":  jnp.zeros((d_model,), jnp.float32),
    }


def _reference(q, k, v, params, d_k, d_v):
    # Pure-JAX f32 reference (matches the PyTorch module in eval mode).
    temperature = float(d_k) ** 0.5
    qp = q @ params["w_qs"].T
    kp = k @ params["w_ks"].T
    vp = v @ params["w_vs"].T
    scores = (qp / temperature) @ jnp.swapaxes(kp, -1, -2)
    attn = jax.nn.softmax(scores, axis=-1)
    ctx = attn @ vp
    y = ctx @ params["fc"].T + q
    mean = y.mean(-1, keepdims=True)
    var = ((y - mean) ** 2).mean(-1, keepdims=True)
    y = (y - mean) / jnp.sqrt(var + 1e-6)
    y = y * params["ln_gamma"] + params["ln_beta"]
    return y, attn[:, None, :, :]


if __name__ == "__main__":
    B, L, d_model, d_k, d_v = 2, 8, 32, 16, 16
    key = jax.random.PRNGKey(0)
    kq, kk, kv, kp = jax.random.split(key, 4)
    q = jax.random.normal(kq, (B, L, d_model), jnp.float32)
    k = jax.random.normal(kk, (B, L, d_model), jnp.float32)
    v = jax.random.normal(kv, (B, L, d_model), jnp.float32)
    params = init_params(kp, d_model, d_k, d_v)

    # General path (distinct q / k / v).
    out, attn = self_attention(q, k, v, params, d_k, d_v)
    out = jax.block_until_ready(out)
    attn = jax.block_until_ready(attn)
    ref_out, ref_attn = _reference(q, k, v, params, d_k, d_v)
    assert out.shape == (B, L, d_model)
    assert attn.shape == (B, 1, L, L)
    # Tolerances account for bf16 matmul operands (f32 accumulation keeps
    # errors small; still catches layout/math bugs).
    assert jnp.allclose(out, ref_out, atol=5e-2, rtol=5e-2)
    assert jnp.allclose(attn, ref_attn, atol=2.5e-2, rtol=2.5e-2)

    # Fused-QKV path (q is k is v).
    out_f, attn_f = self_attention(q, q, q, params, d_k, d_v)
    out_f = jax.block_until_ready(out_f)
    attn_f = jax.block_until_ready(attn_f)
    ref_out_f, ref_attn_f = _reference(q, q, q, params, d_k, d_v)
    assert jnp.allclose(out_f, ref_out_f, atol=5e-2, rtol=5e-2)
    assert jnp.allclose(attn_f, ref_attn_f, atol=2.5e-2, rtol=2.5e-2)

    print("KERNEL_OK")
</pallas_src>

<mosaic_0001>
module attributes {stable_mosaic.version = 11 : i64} {
  func.func @_selfattn_kernel(%arg0: i32, %arg1: memref<16x128xbf16, #tpu.memory_space<vmem>>, %arg2: memref<128x128xbf16, #tpu.memory_space<vmem>>, %arg3: memref<128x128xbf16, #tpu.memory_space<vmem>>, %arg4: memref<128x128xbf16, #tpu.memory_space<vmem>>, %arg5: memref<128x128xbf16, #tpu.memory_space<vmem>>, %arg6: memref<128x128xbf16, #tpu.memory_space<vmem>>, %arg7: memref<128x128xbf16, #tpu.memory_space<vmem>>, %arg8: memref<1x128xf32, #tpu.memory_space<vmem>>, %arg9: memref<1x128xf32, #tpu.memory_space<vmem>>, %arg10: memref<16x128xf32, #tpu.memory_space<vmem>>, %arg11: memref<16x128xf32, #tpu.memory_space<vmem>>) attributes {dimension_semantics = [#tpu.dimension_semantics<parallel>], iteration_bounds = array<i64: 2>, scalar_prefetch = 0 : i64, scratch_operands = 0 : i64, tpu.core_type = #tpu.core_type<tc>, window_params = [{transform_indices = @transform_0, window_bounds = array<i64: 16, 128>}, {transform_indices = @transform_1, window_bounds = array<i64: 128, 128>}, {transform_indices = @transform_2, window_bounds = array<i64: 128, 128>}, {pipeline_mode = #tpu.pipeline_mode<synchronous>, transform_indices = @transform_3, window_bounds = array<i64: 128, 128>}, {pipeline_mode = #tpu.pipeline_mode<synchronous>, transform_indices = @transform_4, window_bounds = array<i64: 128, 128>}, {pipeline_mode = #tpu.pipeline_mode<synchronous>, transform_indices = @transform_5, window_bounds = array<i64: 128, 128>}, {pipeline_mode = #tpu.pipeline_mode<synchronous>, transform_indices = @transform_6, window_bounds = array<i64: 128, 128>}, {pipeline_mode = #tpu.pipeline_mode<synchronous>, transform_indices = @transform_7, window_bounds = array<i64: 1, 128>}, {pipeline_mode = #tpu.pipeline_mode<synchronous>, transform_indices = @transform_8, window_bounds = array<i64: 1, 128>}, {transform_indices = @transform_9, window_bounds = array<i64: 16, 128>}, {transform_indices = @transform_10, window_bounds = array<i64: 16, 128>}]} {
    %c0 = arith.constant 0 : index
    %c0_0 = arith.constant 0 : index
    %0 = vector.load %arg1[%c0, %c0_0] : memref<16x128xbf16, #tpu.memory_space<vmem>>, vector<16x128xbf16>
    %c0_1 = arith.constant 0 : index
    %c0_2 = arith.constant 0 : index
    %1 = vector.load %arg2[%c0_1, %c0_2] : memref<128x128xbf16, #tpu.memory_space<vmem>>, vector<128x128xbf16>
    %c0_3 = arith.constant 0 : index
    %c0_4 = arith.constant 0 : index
    %2 = vector.load %arg3[%c0_3, %c0_4] : memref<128x128xbf16, #tpu.memory_space<vmem>>, vector<128x128xbf16>
    %c0_5 = arith.constant 0 : index
    %c0_6 = arith.constant 0 : index
    %3 = vector.load %arg4[%c0_5, %c0_6] : memref<128x128xbf16, #tpu.memory_space<vmem>>, vector<128x128xbf16>
    %cst = arith.constant dense<0.000000e+00> : vector<16x128xf32>
    %4 = tpu.matmul %0, %3, %cst {dimension_numbers = #tpu.dot_dimension_numbers<[1], [0], [0], [1], [0, 0, 1, 1], [], []>} : vector<16x128xbf16>, vector<128x128xbf16>, vector<16x128xf32> -> vector<16x128xf32>
    %c0_7 = arith.constant 0 : index
    %c0_8 = arith.constant 0 : index
    %5 = vector.load %arg5[%c0_7, %c0_8] : memref<128x128xbf16, #tpu.memory_space<vmem>>, vector<128x128xbf16>
    %cst_9 = arith.constant dense<0.000000e+00> : vector<128x128xf32>
    %6 = tpu.matmul %1, %5, %cst_9 {dimension_numbers = #tpu.dot_dimension_numbers<[1], [0], [0], [1], [0, 0, 1, 1], [], []>} : vector<128x128xbf16>, vector<128x128xbf16>, vector<128x128xf32> -> vector<128x128xf32>
    %c0_10 = arith.constant 0 : index
    %c0_11 = arith.constant 0 : index
    %7 = vector.load %arg6[%c0_10, %c0_11] : memref<128x128xbf16, #tpu.memory_space<vmem>>, vector<128x128xbf16>
    %cst_12 = arith.constant dense<0.000000e+00> : vector<128x128xf32>
    %8 = tpu.matmul %2, %7, %cst_12 {dimension_numbers = #tpu.dot_dimension_numbers<[1], [0], [0], [1], [0, 0, 1, 1], [], []>} : vector<128x128xbf16>, vector<128x128xbf16>, vector<128x128xf32> -> vector<128x128xf32>
    %9 = arith.extf %0 : vector<16x128xbf16> to vector<16x128xf32>
    %10 = vector.shape_cast %4 : vector<16x128xf32> to vector<1x16x128xf32>
    %11 = arith.truncf %10 : vector<1x16x128xf32> to vector<1x16x128xbf16>
    %12 = vector.shape_cast %6 : vector<128x128xf32> to vector<1x128x128xf32>
    %13 = arith.truncf %12 : vector<1x128x128xf32> to vector<1x128x128xbf16>
    %14 = vector.shape_cast %8 : vector<128x128xf32> to vector<1x128x128xf32>
    %15 = arith.truncf %14 : vector<1x128x128xf32> to vector<1x128x128xbf16>
    "tpu.trace_start"() <{level = 10 : i32, message = "bqd,bkd->bqk"}> : () -> ()
    %cst_13 = arith.constant dense<0.000000e+00> : vector<1x16x128xf32>
    %16 = tpu.matmul %11, %13, %cst_13 {dimension_numbers = #tpu.dot_dimension_numbers<[2], [2], [1], [1], [0, 0, 0, 1, 1, 1], [0], [0]>} : vector<1x16x128xbf16>, vector<1x128x128xbf16>, vector<1x16x128xf32> -> vector<1x16x128xf32>
    "tpu.trace_stop"() : () -> ()
    %17 = tpu.iota {dimensions = array<i32: 2>} : vector<1x1x128xi32>
    %c8_i32 = arith.constant 8 : i32
    %18 = vector.broadcast %c8_i32 : i32 to vector<1x1x128xi32>
    %19 = arith.cmpi slt, %17, %18 : vector<1x1x128xi32>
    %cst_14 = arith.constant -1.000000e+30 : f32
    %20 = vector.shape_cast %19 : vector<1x1x128xi1> to vector<1x1x128xi1>
    %21 = vector.broadcast %20 : vector<1x1x128xi1> to vector<1x16x128xi1>
    %22 = vector.broadcast %cst_14 : f32 to vector<1x16x128xf32>
    %23 = arith.select %21, %16, %22 : vector<1x16x128xi1>, vector<1x16x128xf32>
    %cst_15 = arith.constant dense<0xFF800000> : vector<1x16xf32>
    %24 = vector.multi_reduction <maximumf>, %23, %cst_15 [2] : vector<1x16x128xf32> to vector<1x16xf32>
    %25 = vector.shape_cast %24 : vector<1x16xf32> to vector<1x16x1xf32>
    %26 = vector.broadcast %25 : vector<1x16x1xf32> to vector<1x16x128xf32>
    %27 = arith.subf %23, %26 : vector<1x16x128xf32>
    %28 = math.exp %27 : vector<1x16x128xf32>
    %cst_16 = arith.constant dense<0.000000e+00> : vector<1x16xf32>
    %29 = vector.multi_reduction <add>, %28, %cst_16 [2] : vector<1x16x128xf32> to vector<1x16xf32>
    %30 = vector.shape_cast %29 : vector<1x16xf32> to vector<1x16x1xf32>
    %31 = vector.broadcast %30 : vector<1x16x1xf32> to vector<1x16x128xf32>
    %32 = arith.divf %28, %31 : vector<1x16x128xf32>
    %33 = vector.shape_cast %32 : vector<1x16x128xf32> to vector<16x128xf32>
    %c0_17 = arith.constant 0 : index
    %c0_18 = arith.constant 0 : index
    %34 = vector.load %arg11[%c0_17, %c0_18] : memref<16x128xf32, #tpu.memory_space<vmem>>, vector<16x128xf32>
    tpu.vector_store %arg11[%c0_17, %c0_18], %33 {strides = array<i32>} : memref<16x128xf32, #tpu.memory_space<vmem>>, vector<16x128xf32>,
    %35 = arith.truncf %32 : vector<1x16x128xf32> to vector<1x16x128xbf16>
    "tpu.trace_start"() <{level = 10 : i32, message = "bqk,bkd->bqd"}> : () -> ()
    %cst_19 = arith.constant dense<0.000000e+00> : vector<1x16x128xf32>
    %36 = tpu.matmul %35, %15, %cst_19 {dimension_numbers = #tpu.dot_dimension_numbers<[2], [1], [1], [2], [0, 0, 0, 1, 1, 2], [0], [0]>} : vector<1x16x128xbf16>, vector<1x128x128xbf16>, vector<1x16x128xf32> -> vector<1x16x128xf32>
    "tpu.trace_stop"() : () -> ()
    %37 = vector.shape_cast %36 : vector<1x16x128xf32> to vector<16x128xf32>
    %38 = arith.truncf %37 : vector<16x128xf32> to vector<16x128xbf16>
    %c0_20 = arith.constant 0 : index
    %c0_21 = arith.constant 0 : index
    %39 = vector.load %arg7[%c0_20, %c0_21] : memref<128x128xbf16, #tpu.memory_space<vmem>>, vector<128x128xbf16>
    %cst_22 = arith.constant dense<0.000000e+00> : vector<16x128xf32>
    %40 = tpu.matmul %38, %39, %cst_22 {dimension_numbers = #tpu.dot_dimension_numbers<[1], [0], [0], [1], [0, 0, 1, 1], [], []>} : vector<16x128xbf16>, vector<128x128xbf16>, vector<16x128xf32> -> vector<16x128xf32>
    %41 = arith.addf %40, %9 : vector<16x128xf32>
    %cst_23 = arith.constant dense<0.000000e+00> : vector<16xf32>
    %42 = vector.multi_reduction <add>, %41, %cst_23 [1] : vector<16x128xf32> to vector<16xf32>
    %43 = vector.shape_cast %42 : vector<16xf32> to vector<16x1xf32>
    %cst_24 = arith.constant 3.125000e-02 : f32
    %44 = vector.broadcast %cst_24 : f32 to vector<16x1xf32>
    %45 = arith.mulf %43, %44 : vector<16x1xf32>
    %46 = arith.mulf %41, %41 : vector<16x128xf32>
    %cst_25 = arith.constant dense<0.000000e+00> : vector<16xf32>
    %47 = vector.multi_reduction <add>, %46, %cst_25 [1] : vector<16x128xf32> to vector<16xf32>
    %48 = vector.shape_cast %47 : vector<16xf32> to vector<16x1xf32>
    %cst_26 = arith.constant 3.125000e-02 : f32
    %49 = vector.broadcast %cst_26 : f32 to vector<16x1xf32>
    %50 = arith.mulf %48, %49 : vector<16x1xf32>
    %51 = arith.mulf %45, %45 : vector<16x1xf32>
    %52 = arith.subf %50, %51 : vector<16x1xf32>
    %53 = vector.broadcast %45 : vector<16x1xf32> to vector<16x128xf32>
    %54 = arith.subf %41, %53 : vector<16x128xf32>
    %cst_27 = arith.constant 9.99999997E-7 : f32
    %55 = vector.broadcast %cst_27 : f32 to vector<16x1xf32>
    %56 = arith.addf %52, %55 : vector<16x1xf32>
    %57 = math.rsqrt %56 : vector<16x1xf32>
    %58 = vector.broadcast %57 : vector<16x1xf32> to vector<16x128xf32>
    %59 = arith.mulf %54, %58 : vector<16x128xf32>
    %c0_28 = arith.constant 0 : index
    %c0_29 = arith.constant 0 : index
    %60 = vector.load %arg8[%c0_28, %c0_29] : memref<1x128xf32, #tpu.memory_space<vmem>>, vector<1x128xf32>
    %61 = vector.broadcast %60 : vector<1x128xf32> to vector<16x128xf32>
    %62 = arith.mulf %59, %61 : vector<16x128xf32>
    %c0_30 = arith.constant 0 : index
    %c0_31 = arith.constant 0 : index
    %63 = vector.load %arg9[%c0_30, %c0_31] : memref<1x128xf32, #tpu.memory_space<vmem>>, vector<1x128xf32>
    %64 = vector.broadcast %63 : vector<1x128xf32> to vector<16x128xf32>
    %65 = arith.addf %62, %64 : vector<16x128xf32>
    %c0_32 = arith.constant 0 : index
    %c0_33 = arith.constant 0 : index
    %66 = vector.load %arg10[%c0_32, %c0_33] : memref<16x128xf32, #tpu.memory_space<vmem>>, vector<16x128xf32>
    tpu.vector_store %arg10[%c0_32, %c0_33], %65 {strides = array<i32>} : memref<16x128xf32, #tpu.memory_space<vmem>>, vector<16x128xf32>,
    return
  }
  func.func @transform_0(%arg0: i32) -> (i32, i32) {
    %c0_i32 = arith.constant 0 : i32
    %c0_i32_0 = arith.constant 0 : i32
    return %arg0, %c0_i32 : i32, i32
  }
  func.func @transform_1(%arg0: i32) -> (i32, i32) {
    %c0_i32 = arith.constant 0 : i32
    %c0_i32_0 = arith.constant 0 : i32
    return %arg0, %c0_i32 : i32, i32
  }
  func.func @transform_2(%arg0: i32) -> (i32, i32) {
    %c0_i32 = arith.constant 0 : i32
    %c0_i32_0 = arith.constant 0 : i32
    return %arg0, %c0_i32 : i32, i32
  }
  func.func @transform_3(%arg0: i32) -> (i32, i32) {
    %c0_i32 = arith.constant 0 : i32
    %c0_i32_0 = arith.constant 0 : i32
    %c0_i32_1 = arith.constant 0 : i32
    return %c0_i32, %c0_i32_0 : i32, i32
  }
  func.func @transform_4(%arg0: i32) -> (i32, i32) {
    %c0_i32 = arith.constant 0 : i32
    %c0_i32_0 = arith.constant 0 : i32
    %c0_i32_1 = arith.constant 0 : i32
    return %c0_i32, %c0_i32_0 : i32, i32
  }
  func.func @transform_5(%arg0: i32) -> (i32, i32) {
    %c0_i32 = arith.constant 0 : i32
    %c0_i32_0 = arith.constant 0 : i32
    %c0_i32_1 = arith.constant 0 : i32
    return %c0_i32, %c0_i32_0 : i32, i32
  }
  func.func @transform_6(%arg0: i32) -> (i32, i32) {
    %c0_i32 = arith.constant 0 : i32
    %c0_i32_0 = arith.constant 0 : i32
    %c0_i32_1 = arith.constant 0 : i32
    return %c0_i32, %c0_i32_0 : i32, i32
  }
  func.func @transform_7(%arg0: i32) -> (i32, i32) {
    %c0_i32 = arith.constant 0 : i32
    %c0_i32_0 = arith.constant 0 : i32
    %c0_i32_1 = arith.constant 0 : i32
    return %c0_i32, %c0_i32_0 : i32, i32
  }
  func.func @transform_8(%arg0: i32) -> (i32, i32) {
    %c0_i32 = arith.constant 0 : i32
    %c0_i32_0 = arith.constant 0 : i32
    %c0_i32_1 = arith.constant 0 : i32
    return %c0_i32, %c0_i32_0 : i32, i32
  }
  func.func @transform_9(%arg0: i32) -> (i32, i32) {
    %c0_i32 = arith.constant 0 : i32
    %c0_i32_0 = arith.constant 0 : i32
    return %arg0, %c0_i32 : i32, i32
  }
  func.func @transform_10(%arg0: i32) -> (i32, i32) {
    %c0_i32 = arith.constant 0 : i32
    %c0_i32_0 = arith.constant 0 : i32
    return %arg0, %c0_i32 : i32, i32
  }
}

</mosaic_0001>

<llo_original>
// kernel: tpu_custom_call.1
$region0: #{tpu_custom_call.1}
  #allocation0 [shape = 'u32[]', space=smem, size = 0x4, offset = 0x4, fixed_abs, tag = 'smem constant byte address 0x4 - core index']
  #allocation1 [shape = 'u32[144,128]{1,0:T(1,128)}', space=vmem, size = 0x12000, scoped, tag = 'internal scratch']
  %s0 = inlined_call_operand.hbm [shape: bf16[32,128], index: 0, kind: input, shape index: {}]
  %s1 = inlined_call_operand.hbm [shape: bf16[256,128], index: 1, kind: input, shape index: {}]
  %s2 = inlined_call_operand.hbm [shape: bf16[256,128], index: 2, kind: input, shape index: {}]
  %s3 = inlined_call_operand.hbm [shape: bf16[128,128], index: 3, kind: input, shape index: {}]
  %s4 = inlined_call_operand.hbm [shape: bf16[128,128], index: 4, kind: input, shape index: {}]
  %s5 = inlined_call_operand.hbm [shape: bf16[128,128], index: 5, kind: input, shape index: {}]
  %s6 = inlined_call_operand.hbm [shape: bf16[128,128], index: 6, kind: input, shape index: {}]
  %s7 = inlined_call_operand.vmem [shape: f32[1,128], index: 7, kind: input, shape index: {}]
  %s8 = inlined_call_operand.vmem [shape: f32[1,128], index: 8, kind: input, shape index: {}]
  %s9 = inlined_call_operand.hbm [shape: f32[32,128], index: 9, kind: output, shape index: {0}]
  %s10 = inlined_call_operand.hbm [shape: f32[32,128], index: 10, kind: output, shape index: {1}]
  %11 = xla_tuple %s9, %s10
  %s12 = sld [smem:[#allocation0]]
  $region105: #{tpu_custom_call.1} parent=0
    _
  %s14 = ssub.s32 1, %s12
  %s15 = scalar_select 0, %s14, %s12
  $region1: #{tpu_custom_call.1} parent=0
    #allocation2 [shape = 'u8[8192]{0}', space=vmem, size = 0x2000, scoped, tag = 'input window, operand 0']
    #allocation3 [shape = 's32[2]{0}', space=sflag, size = 0x8, scoped, tag = 'scoped memory for tpu_custom_call.1']
    #allocation4 [shape = 's32[2]{0}', space=sflag, size = 0x8, scoped, tag = 'scoped memory for tpu_custom_call.1']
    #allocation5 [shape = 'u8[65536]{0}', space=vmem, size = 0x10000, scoped, tag = 'input window, operand 1']
    #allocation6 [shape = 's32[2]{0}', space=sflag, size = 0x8, scoped, tag = 'scoped memory for tpu_custom_call.1']
    #allocation7 [shape = 'u8[65536]{0}', space=vmem, size = 0x10000, scoped, tag = 'input window, operand 2']
    #allocation8 [shape = 'u8[32768]{0}', space=vmem, size = 0x8000, scoped, tag = 'input window, operand 3, single buffered']
    #allocation9 [shape = 's32[1]{0}', space=sflag, size = 0x4, scoped, tag = 'scoped memory for tpu_custom_call.1']
    #allocation10 [shape = 'u8[32768]{0}', space=vmem, size = 0x8000, scoped, tag = 'input window, operand 4, single buffered']
    #allocation11 [shape = 'u8[32768]{0}', space=vmem, size = 0x8000, scoped, tag = 'input window, operand 5, single buffered']
    #allocation12 [shape = 's32[1]{0}', space=sflag, size = 0x4, scoped, tag = 'scoped memory for tpu_custom_call.1']
    #allocation13 [shape = 'u8[32768]{0}', space=vmem, size = 0x8000, scoped, tag = 'input window, operand 6, single buffered']
    #allocation14 [shape = 'u8[16384]{0}', space=vmem, size = 0x4000, scoped, tag = 'output window, operand 0']
    #allocation15 [shape = 'u8[16384]{0}', space=vmem, size = 0x4000, scoped, tag = 'output window, operand 1']
    #allocation16 [shape = 's32[2]{0}', space=sflag, size = 0x8, scoped, tag = 'scoped memory for tpu_custom_call.1']
    %16 = vsyncpa [#allocation3], 0
    %s17 = scalar_lea.sflag [#allocation3], 1
    %18 = vsyncpa %s17, 0
    %19 = vsyncpa [#allocation6], 0
    %s20 = scalar_lea.sflag [#allocation6], 1
    %21 = vsyncpa %s20, 0
    %22 = vsyncpa [#allocation9], 0
    %23 = vsyncpa [#allocation12], 0
    %24 = vsyncpa [#allocation4], 0
    %s25 = scalar_lea.sflag [#allocation4], 1
    %26 = vsyncpa %s25, 0
    %27 = vsyncpa [#allocation16], 0
    %s28 = scalar_lea.sflag [#allocation16], 1
    %29 = vsyncpa %s28, 0
    loop: start=0, step=1, limit=4
    $region2: #{tpu_custom_call.1} parent=1 // loop_pre_header
      _
    $region3: #{tpu_custom_call.1} parent=1 // loop_header
      %s31 = sphi 0, %s35
      %p32 = scmp.ge.s32.totalorder %s31, 4
      %s41 = sphi 0, %s43
      %s44 = sphi 0, %s41
      %s45 = sphi 0, %s44
      %s61 = sphi 0, %s45
      %s67 = sphi 0, %s69
      %s70 = sphi 0, %s67
      %s71 = sphi 0, %s70
      %s87 = sphi 0, %s71
      %s93 = sphi 0, %s95
      %s96 = sphi 0, %s93
      %s97 = sphi 0, %s96
      %s113 = sphi 0, %s97
      %s117 = sphi 0, %s117
      %s119 = sphi 0, %s117
      %s120 = sphi 0, %s119
      %s134 = sphi 0, %s120
      %s138 = sphi 0, %s138
      %s140 = sphi 0, %s138
      %s141 = sphi 0, %s140
      %s155 = sphi 0, %s141
      %s159 = sphi 0, %s159
      %s161 = sphi 0, %s159
      %s162 = sphi 0, %s161
      %s176 = sphi 0, %s162
      %s180 = sphi 0, %s180
      %s182 = sphi 0, %s180
      %s183 = sphi 0, %s182
      %s197 = sphi 0, %s183
      %s201 = sphi 0, %s201
      %s203 = sphi 0, %s201
      %s204 = sphi 0, %s203
      %s218 = sphi 0, %s204
      %s222 = sphi 0, %s222
      %s224 = sphi 0, %s222
      %s225 = sphi 0, %s224
      %s239 = sphi 0, %s225
      %s245 = sphi 0, %s247
      %s248 = sphi 0, %s245
      %s249 = sphi 0, %s248
      %s265 = sphi 0, %s249
      %s271 = sphi 0, %s273
      %s274 = sphi 0, %s271
      %s275 = sphi 0, %s274
      %s291 = sphi 0, %s275
    $region4: #{tpu_custom_call.1} parent=1 // loop_header_branch
      %34 = sbr.rel (%p32) target = $region8
    $region5: #{tpu_custom_call.1} parent=1 // loop_body
      %s36 = ssub.s32 %s31, 1
      %s37 = ssub.s32 %s31, 2
      %s38 = sadd.s32 %s31, 1
      %s39 = ssub.s32 %s31, %s38
      %p40 = scmp.eq.s32.totalorder %s39, 0
      %s42 = sadd.s32 %s41, 1
      %s43 = scalar_select %p40, %s41, %s42
      %p46 = pneg %p40
      %p47 = scmp.eq.s32.totalorder %s31, 1
      %p48 = por %p46, %p47
      %p49 = scmp.ne.s32.totalorder %s41, %s44
      %p50 = scmp.eq.s32.totalorder %s31, 0
      %p51 = por %p49, %p50
      %p52 = scmp.ne.s32.totalorder %s41, %s44
      %p53 = scmp.eq.s32.totalorder %s36, 1
      %p54 = por %p52, %p53
      %p55 = scmp.ne.s32.totalorder %s44, %s45
      %p56 = scmp.eq.s32.totalorder %s36, 0
      %p57 = por %p55, %p56
      %p58 = scmp.ne.s32.totalorder %s44, %s45
      %p59 = scmp.eq.s32.totalorder %s37, 1
      %p60 = por %p58, %p59
      %p62 = scmp.ne.s32.totalorder %s45, %s61
      %p63 = scmp.eq.s32.totalorder %s37, 0
      %p64 = por %p62, %p63
      %s65 = ssub.s32 %s31, %s38
      %p66 = scmp.eq.s32.totalorder %s65, 0
      %s68 = sadd.s32 %s67, 1
      %s69 = scalar_select %p66, %s67, %s68
      %p72 = pneg %p66
      %p73 = scmp.eq.s32.totalorder %s31, 1
      %p74 = por %p72, %p73
      %p75 = scmp.ne.s32.totalorder %s67, %s70
      %p76 = scmp.eq.s32.totalorder %s31, 0
      %p77 = por %p75, %p76
      %p78 = scmp.ne.s32.totalorder %s67, %s70
      %p79 = scmp.eq.s32.totalorder %s36, 1
      %p80 = por %p78, %p79
      %p81 = scmp.ne.s32.totalorder %s70, %s71
      %p82 = scmp.eq.s32.totalorder %s36, 0
      %p83 = por %p81, %p82
      %p84 = scmp.ne.s32.totalorder %s70, %s71
      %p85 = scmp.eq.s32.totalorder %s37, 1
      %p86 = por %p84, %p85
      %p88 = scmp.ne.s32.totalorder %s71, %s87
      %p89 = scmp.eq.s32.totalorder %s37, 0
      %p90 = por %p88, %p89
      %s91 = ssub.s32 %s31, %s38
      %p92 = scmp.eq.s32.totalorder %s91, 0
      %s94 = sadd.s32 %s93, 1
      %s95 = scalar_select %p92, %s93, %s94
      %p98 = pneg %p92
      %p99 = scmp.eq.s32.totalorder %s31, 1
      %p100 = por %p98, %p99
      %p101 = scmp.ne.s32.totalorder %s93, %s96
      %p102 = scmp.eq.s32.totalorder %s31, 0
      %p103 = por %p101, %p102
      %p104 = scmp.ne.s32.totalorder %s93, %s96
      %p105 = scmp.eq.s32.totalorder %s36, 1
      %p106 = por %p104, %p105
      %p107 = scmp.ne.s32.totalorder %s96, %s97
      %p108 = scmp.eq.s32.totalorder %s36, 0
      %p109 = por %p107, %p108
      %p110 = scmp.ne.s32.totalorder %s96, %s97
      %p111 = scmp.eq.s32.totalorder %s37, 1
      %p112 = por %p110, %p111
      %p114 = scmp.ne.s32.totalorder %s97, %s113
      %p115 = scmp.eq.s32.totalorder %s37, 0
      %p116 = por %p114, %p115
      %s118 = sadd.s32 %s117, 1
      %p121 = scmp.eq.s32.totalorder %s31, 1
      %p122 = scmp.ne.s32.totalorder %s117, %s119
      %p123 = scmp.eq.s32.totalorder %s31, 0
      %p124 = por %p122, %p123
      %p125 = scmp.ne.s32.totalorder %s117, %s119
      %p126 = scmp.eq.s32.totalorder %s36, 1
      %p127 = por %p125, %p126
      %p128 = scmp.ne.s32.totalorder %s119, %s120
      %p129 = scmp.eq.s32.totalorder %s36, 0
      %p130 = por %p128, %p129
      %p131 = scmp.ne.s32.totalorder %s119, %s120
      %p132 = scmp.eq.s32.totalorder %s37, 1
      %p133 = por %p131, %p132
      %p135 = scmp.ne.s32.totalorder %s120, %s134
      %p136 = scmp.eq.s32.totalorder %s37, 0
      %p137 = por %p135, %p136
      %s139 = sadd.s32 %s138, 1
      %p142 = scmp.eq.s32.totalorder %s31, 1
      %p143 = scmp.ne.s32.totalorder %s138, %s140
      %p144 = scmp.eq.s32.totalorder %s31, 0
      %p145 = por %p143, %p144
      %p146 = scmp.ne.s32.totalorder %s138, %s140
      %p147 = scmp.eq.s32.totalorder %s36, 1
      %p148 = por %p146, %p147
      %p149 = scmp.ne.s32.totalorder %s140, %s141
      %p150 = scmp.eq.s32.totalorder %s36, 0
      %p151 = por %p149, %p150
      %p152 = scmp.ne.s32.totalorder %s140, %s141
      %p153 = scmp.eq.s32.totalorder %s37, 1
      %p154 = por %p152, %p153
      %p156 = scmp.ne.s32.totalorder %s141, %s155
      %p157 = scmp.eq.s32.totalorder %s37, 0
      %p158 = por %p156, %p157
      %s160 = sadd.s32 %s159, 1
      %p163 = scmp.eq.s32.totalorder %s31, 1
      %p164 = scmp.ne.s32.totalorder %s159, %s161
      %p165 = scmp.eq.s32.totalorder %s31, 0
      %p166 = por %p164, %p165
      %p167 = scmp.ne.s32.totalorder %s159, %s161
      %p168 = scmp.eq.s32.totalorder %s36, 1
      %p169 = por %p167, %p168
      %p170 = scmp.ne.s32.totalorder %s161, %s162
      %p171 = scmp.eq.s32.totalorder %s36, 0
      %p172 = por %p170, %p171
      %p173 = scmp.ne.s32.totalorder %s161, %s162
      %p174 = scmp.eq.s32.totalorder %s37, 1
      %p175 = por %p173, %p174
      %p177 = scmp.ne.s32.totalorder %s162, %s176
      %p178 = scmp.eq.s32.totalorder %s37, 0
      %p179 = por %p177, %p178
      %s181 = sadd.s32 %s180, 1
      %p184 = scmp.eq.s32.totalorder %s31, 1
      %p185 = scmp.ne.s32.totalorder %s180, %s182
      %p186 = scmp.eq.s32.totalorder %s31, 0
      %p187 = por %p185, %p186
      %p188 = scmp.ne.s32.totalorder %s180, %s182
      %p189 = scmp.eq.s32.totalorder %s36, 1
      %p190 = por %p188, %p189
      %p191 = scmp.ne.s32.totalorder %s182, %s183
      %p192 = scmp.eq.s32.totalorder %s36, 0
      %p193 = por %p191, %p192
      %p194 = scmp.ne.s32.totalorder %s182, %s183
      %p195 = scmp.eq.s32.totalorder %s37, 1
      %p196 = por %p194, %p195
      %p198 = scmp.ne.s32.totalorder %s183, %s197
      %p199 = scmp.eq.s32.totalorder %s37, 0
      %p200 = por %p198, %p199
      %s202 = sadd.s32 %s201, 1
      %p205 = scmp.eq.s32.totalorder %s31, 1
      %p206 = scmp.ne.s32.totalorder %s201, %s203
      %p207 = scmp.eq.s32.totalorder %s31, 0
      %p208 = por %p206, %p207
      %p209 = scmp.ne.s32.totalorder %s201, %s203
      %p210 = scmp.eq.s32.totalorder %s36, 1
      %p211 = por %p209, %p210
      %p212 = scmp.ne.s32.totalorder %s203, %s204
      %p213 = scmp.eq.s32.totalorder %s36, 0
      %p214 = por %p212, %p213
      %p215 = scmp.ne.s32.totalorder %s203, %s204
      %p216 = scmp.eq.s32.totalorder %s37, 1
      %p217 = por %p215, %p216
      %p219 = scmp.ne.s32.totalorder %s204, %s218
      %p220 = scmp.eq.s32.totalorder %s37, 0
      %p221 = por %p219, %p220
      %s223 = sadd.s32 %s222, 1
      %p226 = scmp.eq.s32.totalorder %s31, 1
      %p227 = scmp.ne.s32.totalorder %s222, %s224
      %p228 = scmp.eq.s32.totalorder %s31, 0
      %p229 = por %p227, %p228
      %p230 = scmp.ne.s32.totalorder %s222, %s224
      %p231 = scmp.eq.s32.totalorder %s36, 1
      %p232 = por %p230, %p231
      %p233 = scmp.ne.s32.totalorder %s224, %s225
      %p234 = scmp.eq.s32.totalorder %s36, 0
      %p235 = por %p233, %p234
      %p236 = scmp.ne.s32.totalorder %s224, %s225
      %p237 = scmp.eq.s32.totalorder %s37, 1
      %p238 = por %p236, %p237
      %p240 = scmp.ne.s32.totalorder %s225, %s239
      %p241 = scmp.eq.s32.totalorder %s37, 0
      %p242 = por %p240, %p241
      %s243 = ssub.s32 %s31, %s38
      %p244 = scmp.eq.s32.totalorder %s243, 0
      %s246 = sadd.s32 %s245, 1
      %s247 = scalar_select %p244, %s245, %s246
      %p250 = pneg %p244
      %p251 = scmp.eq.s32.totalorder %s31, 1
      %p252 = por %p250, %p251
      %p253 = scmp.ne.s32.totalorder %s245, %s248
      %p254 = scmp.eq.s32.totalorder %s31, 0
      %p255 = por %p253, %p254
      %p256 = scmp.ne.s32.totalorder %s245, %s248
      %p257 = scmp.eq.s32.totalorder %s36, 1
      %p258 = por %p256, %p257
      %p259 = scmp.ne.s32.totalorder %s248, %s249
      %p260 = scmp.eq.s32.totalorder %s36, 0
      %p261 = por %p259, %p260
      %p262 = scmp.ne.s32.totalorder %s248, %s249
      %p263 = scmp.eq.s32.totalorder %s37, 1
      %p264 = por %p262, %p263
      %p266 = scmp.ne.s32.totalorder %s249, %s265
      %p267 = scmp.eq.s32.totalorder %s37, 0
      %p268 = por %p266, %p267
      %s269 = ssub.s32 %s31, %s38
      %p270 = scmp.eq.s32.totalorder %s269, 0
      %s272 = sadd.s32 %s271, 1
      %s273 = scalar_select %p270, %s271, %s272
      %p276 = pneg %p270
      %p277 = scmp.eq.s32.totalorder %s31, 1
      %p278 = por %p276, %p277
      %p279 = scmp.ne.s32.totalorder %s271, %s274
      %p280 = scmp.eq.s32.totalorder %s31, 0
      %p281 = por %p279, %p280
      %p282 = scmp.ne.s32.totalorder %s271, %s274
      %p283 = scmp.eq.s32.totalorder %s36, 1
      %p284 = por %p282, %p283
      %p285 = scmp.ne.s32.totalorder %s274, %s275
      %p286 = scmp.eq.s32.totalorder %s36, 0
      %p287 = por %p285, %p286
      %p288 = scmp.ne.s32.totalorder %s274, %s275
      %p289 = scmp.eq.s32.totalorder %s37, 1
      %p290 = por %p288, %p289
      %p292 = scmp.ne.s32.totalorder %s275, %s291
      %p293 = scmp.eq.s32.totalorder %s37, 0
      %p294 = por %p292, %p293
      %p295 = scmp.le.s32.totalorder 1, %s31
      %p296 = scmp.lt.s32.totalorder %s31, 3
      %p297 = pnand %p295, %p296
      %p298 = pneg %p297
      // Predicated region
      $region9: #{tpu_custom_call.1} parent=5 // pred_check
        _
      $region10: #{tpu_custom_call.1} parent=5 // pred_check_branch
        %300 = sbr.rel (%p297) target = $region12
      $region11: #{tpu_custom_call.1} parent=5 // pred_region
        %s301 = ssub.s32 %s31, 1
        // Predicated region
        $region13: #{tpu_custom_call.1} parent=11 // pred_check
          %p302 = pneg %p130
        $region14: #{tpu_custom_call.1} parent=11 // pred_check_branch
          %304 = sbr.rel (%p302) target = $region16
        $region15: #{tpu_custom_call.1} parent=11 // pred_region
          %s306 = ssub.s32 1024, 1024
          %307 = vsyncadd [#allocation9], %s306
          %s308 = sshll.u32 [#allocation8], 4
          %s309 = int_to_ptr.vmem [resolvable:$true] %s308
          %314 = dma.hbm_to_vmem [thread:$0]  %s3, 1024, %s309, [#allocation9], 64, 64, 4
        $region16: #{tpu_custom_call.1} parent=11 // pred_fallthru
          _
        // Predicated region
        $region17: #{tpu_custom_call.1} parent=11 // pred_check
          %p315 = pneg %p151
        $region18: #{tpu_custom_call.1} parent=11 // pred_check_branch
          %317 = sbr.rel (%p315) target = $region20
        $region19: #{tpu_custom_call.1} parent=11 // pred_region
          %s319 = ssub.s32 1024, 1024
          %320 = vsyncadd [#allocation9], %s319
          %s321 = sshll.u32 [#allocation10], 4
          %s322 = int_to_ptr.vmem [resolvable:$true] %s321
          %327 = dma.hbm_to_vmem [thread:$0]  %s4, 1024, %s322, [#allocation9], 64, 64, 4
        $region20: #{tpu_custom_call.1} parent=11 // pred_fallthru
          _
        // Predicated region
        $region21: #{tpu_custom_call.1} parent=11 // pred_check
          %p328 = pneg %p172
        $region22: #{tpu_custom_call.1} parent=11 // pred_check_branch
          %330 = sbr.rel (%p328) target = $region24
        $region23: #{tpu_custom_call.1} parent=11 // pred_region
          %s332 = ssub.s32 1024, 1024
          %333 = vsyncadd [#allocation12], %s332
          %s334 = sshll.u32 [#allocation11], 4
          %s335 = int_to_ptr.vmem [resolvable:$true] %s334
          %340 = dma.hbm_to_vmem [thread:$0]  %s5, 1024, %s335, [#allocation12], 64, 64, 4
        $region24: #{tpu_custom_call.1} parent=11 // pred_fallthru
          _
        // Predicated region
        $region25: #{tpu_custom_call.1} parent=11 // pred_check
          %p341 = pneg %p193
        $region26: #{tpu_custom_call.1} parent=11 // pred_check_branch
          %343 = sbr.rel (%p341) target = $region28
        $region27: #{tpu_custom_call.1} parent=11 // pred_region
          %s345 = ssub.s32 1024, 1024
          %346 = vsyncadd [#allocation12], %s345
          %s347 = sshll.u32 [#allocation13], 4
          %s348 = int_to_ptr.vmem [resolvable:$true] %s347
          %353 = dma.hbm_to_vmem [thread:$0]  %s6, 1024, %s348, [#allocation12], 64, 64, 4
        $region28: #{tpu_custom_call.1} parent=11 // pred_fallthru
          _
        // Predicated region
        $region29: #{tpu_custom_call.1} parent=11 // pred_check
          %p354 = pneg %p214
        $region30: #{tpu_custom_call.1} parent=11 // pred_check_branch
          %356 = sbr.rel (%p354) target = $region32
        $region31: #{tpu_custom_call.1} parent=11 // pred_region
          _
        $region32: #{tpu_custom_call.1} parent=11 // pred_fallthru
          _
        // Predicated region
        $region33: #{tpu_custom_call.1} parent=11 // pred_check
          %p357 = pneg %p235
        $region34: #{tpu_custom_call.1} parent=11 // pred_check_branch
          %359 = sbr.rel (%p357) target = $region36
        $region35: #{tpu_custom_call.1} parent=11 // pred_region
          _
        $region36: #{tpu_custom_call.1} parent=11 // pred_fallthru
          _
      $region12: #{tpu_custom_call.1} parent=5 // pred_fallthru
        _
      %p360 = scmp.lt.s32.totalorder %s31, 2
      // Predicated region
      $region37: #{tpu_custom_call.1} parent=5 // pred_check
        %p361 = pneg %p360
      $region38: #{tpu_custom_call.1} parent=5 // pred_check_branch
        %363 = sbr.rel (%p361) target = $region40
      $region39: #{tpu_custom_call.1} parent=5 // pred_region
        // Predicated region
        $region41: #{tpu_custom_call.1} parent=39 // pred_check
          %p364 = pneg %p51
        $region42: #{tpu_custom_call.1} parent=39 // pred_check_branch
          %366 = sbr.rel (%p364) target = $region44
        $region43: #{tpu_custom_call.1} parent=39 // pred_region
          %s367 = sand.u32 %s41, 1
          %s368 = scalar_lea.sflag [#allocation3], %s367
          %s369 = sand.u32 %s41, 1
          %s370 = smul.addr %s369, 8
          %s371 = scalar_lea.vmem [#allocation2], %s370
          %s372 = smul.u32 2, %s31
          %s374 = ssub.s32 128, 128
          %375 = vsyncadd %s368, %s374
          %s376 = smul.addr %s372, 64
          %s377 = scalar_lea.hbm %s0, %s376
          %s378 = sshll.u32 %s371, 4
          %s379 = int_to_ptr.vmem [resolvable:$true] %s378
          %384 = dma.hbm_to_vmem [thread:$0]  %s377, 128, %s379, %s368, 64, 64, 4
        $region44: #{tpu_custom_call.1} parent=39 // pred_fallthru
          _
        // Predicated region
        $region45: #{tpu_custom_call.1} parent=39 // pred_check
          %p385 = pneg %p77
        $region46: #{tpu_custom_call.1} parent=39 // pred_check_branch
          %387 = sbr.rel (%p385) target = $region48
        $region47: #{tpu_custom_call.1} parent=39 // pred_region
          %s388 = sand.u32 %s31, 1
          %s389 = scalar_lea.sflag [#allocation6], %s388
          %s390 = sand.u32 %s67, 1
          %s391 = smul.addr %s390, 64
          %s392 = scalar_lea.vmem [#allocation5], %s391
          %s393 = smul.u32 16, %s31
          %s395 = ssub.s32 1024, 1024
          %396 = vsyncadd %s389, %s395
          %s397 = smul.addr %s393, 64
          %s398 = scalar_lea.hbm %s1, %s397
          %s399 = sshll.u32 %s392, 4
          %s400 = int_to_ptr.vmem [resolvable:$true] %s399
          %405 = dma.hbm_to_vmem [thread:$0]  %s398, 1024, %s400, %s389, 64, 64, 4
        $region48: #{tpu_custom_call.1} parent=39 // pred_fallthru
          _
        // Predicated region
        $region49: #{tpu_custom_call.1} parent=39 // pred_check
          %p406 = pneg %p103
        $region50: #{tpu_custom_call.1} parent=39 // pred_check_branch
          %408 = sbr.rel (%p406) target = $region52
        $region51: #{tpu_custom_call.1} parent=39 // pred_region
          %s409 = sand.u32 %s31, 1
          %s410 = scalar_lea.sflag [#allocation6], %s409
          %s411 = sand.u32 %s93, 1
          %s412 = smul.addr %s411, 64
          %s413 = scalar_lea.vmem [#allocation7], %s412
          %s414 = smul.u32 16, %s31
          %s416 = ssub.s32 1024, 1024
          %417 = vsyncadd %s410, %s416
          %s418 = smul.addr %s414, 64
          %s419 = scalar_lea.hbm %s2, %s418
          %s420 = sshll.u32 %s413, 4
          %s421 = int_to_ptr.vmem [resolvable:$true] %s420
          %426 = dma.hbm_to_vmem [thread:$0]  %s419, 1024, %s421, %s410, 64, 64, 4
        $region52: #{tpu_custom_call.1} parent=39 // pred_fallthru
          _
      $region40: #{tpu_custom_call.1} parent=5 // pred_fallthru
        _
      %p427 = scmp.le.s32.totalorder 1, %s31
      %p428 = scmp.lt.s32.totalorder %s31, 3
      %p429 = pnand %p427, %p428
      %p430 = pneg %p429
      // Predicated region
      $region53: #{tpu_custom_call.1} parent=5 // pred_check
        _
      $region54: #{tpu_custom_call.1} parent=5 // pred_check_branch
        %432 = sbr.rel (%p429) target = $region56
      $region55: #{tpu_custom_call.1} parent=5 // pred_region
        %s433 = ssub.s32 %s31, 1
        %s434 = sand.u32 %s44, 1
        %s435 = scalar_lea.sflag [#allocation3], %s434
        %s436 = sand.u32 %s44, 1
        %s437 = smul.addr %s436, 8
        %s438 = scalar_lea.vmem [#allocation2], %s437
        // Predicated region
        $region57: #{tpu_custom_call.1} parent=55 // pred_check
          %p439 = pneg %p57
        $region58: #{tpu_custom_call.1} parent=55 // pred_check_branch
          %441 = sbr.rel (%p439) target = $region60
        $region59: #{tpu_custom_call.1} parent=55 // pred_region
          %442 = dma.done %s435, 128
        $region60: #{tpu_custom_call.1} parent=55 // pred_fallthru
          _
        %s443 = sand.u32 %s36, 1
        %s444 = scalar_lea.sflag [#allocation6], %s443
        %s445 = sand.u32 %s70, 1
        %s446 = smul.addr %s445, 64
        %s447 = scalar_lea.vmem [#allocation5], %s446
        // Predicated region
        $region61: #{tpu_custom_call.1} parent=55 // pred_check
          %p448 = pneg %p83
        $region62: #{tpu_custom_call.1} parent=55 // pred_check_branch
          %450 = sbr.rel (%p448) target = $region64
        $region63: #{tpu_custom_call.1} parent=55 // pred_region
          %451 = dma.done %s444, 1024
        $region64: #{tpu_custom_call.1} parent=55 // pred_fallthru
          _
        %s452 = sand.u32 %s36, 1
        %s453 = scalar_lea.sflag [#allocation6], %s452
        %s454 = sand.u32 %s96, 1
        %s455 = smul.addr %s454, 64
        %s456 = scalar_lea.vmem [#allocation7], %s455
        // Predicated region
        $region65: #{tpu_custom_call.1} parent=55 // pred_check
          %p457 = pneg %p109
        $region66: #{tpu_custom_call.1} parent=55 // pred_check_branch
          %459 = sbr.rel (%p457) target = $region68
        $region67: #{tpu_custom_call.1} parent=55 // pred_region
          %460 = dma.done %s453, 1024
        $region68: #{tpu_custom_call.1} parent=55 // pred_fallthru
          _
        // Predicated region
        $region69: #{tpu_custom_call.1} parent=55 // pred_check
          %p461 = pneg %p130
        $region70: #{tpu_custom_call.1} parent=55 // pred_check_branch
          %463 = sbr.rel (%p461) target = $region72
        $region71: #{tpu_custom_call.1} parent=55 // pred_region
          %464 = dma.done [#allocation9], 1024
        $region72: #{tpu_custom_call.1} parent=55 // pred_fallthru
          _
        // Predicated region
        $region73: #{tpu_custom_call.1} parent=55 // pred_check
          %p465 = pneg %p151
        $region74: #{tpu_custom_call.1} parent=55 // pred_check_branch
          %467 = sbr.rel (%p465) target = $region76
        $region75: #{tpu_custom_call.1} parent=55 // pred_region
          %468 = dma.done [#allocation9], 1024
        $region76: #{tpu_custom_call.1} parent=55 // pred_fallthru
          _
        // Predicated region
        $region77: #{tpu_custom_call.1} parent=55 // pred_check
          %p469 = pneg %p172
        $region78: #{tpu_custom_call.1} parent=55 // pred_check_branch
          %471 = sbr.rel (%p469) target = $region80
        $region79: #{tpu_custom_call.1} parent=55 // pred_region
          %472 = dma.done [#allocation12], 1024
        $region80: #{tpu_custom_call.1} parent=55 // pred_fallthru
          _
        // Predicated region
        $region81: #{tpu_custom_call.1} parent=55 // pred_check
          %p473 = pneg %p193
        $region82: #{tpu_custom_call.1} parent=55 // pred_check_branch
          %475 = sbr.rel (%p473) target = $region84
        $region83: #{tpu_custom_call.1} parent=55 // pred_region
          %476 = dma.done [#allocation12], 1024
        $region84: #{tpu_custom_call.1} parent=55 // pred_fallthru
          _
        %s477 = sand.u32 %s44, 1
        %s478 = scalar_lea.sflag [#allocation3], %s477
        %s479 = sand.u32 %s44, 1
        %s480 = smul.addr %s479, 8
        %s481 = scalar_lea.vmem [#allocation2], %s480
        %p482 = pneg %p57
        %p483 = pneg %p54
        %s484 = sand.u32 %s36, 1
        %s485 = scalar_lea.sflag [#allocation6], %s484
        %s486 = sand.u32 %s70, 1
        %s487 = smul.addr %s486, 64
        %s488 = scalar_lea.vmem [#allocation5], %s487
        %p489 = pneg %p83
        %p490 = pneg %p80
        %s491 = sand.u32 %s36, 1
        %s492 = scalar_lea.sflag [#allocation6], %s491
        %s493 = sand.u32 %s96, 1
        %s494 = smul.addr %s493, 64
        %s495 = scalar_lea.vmem [#allocation7], %s494
        %p496 = pneg %p109
        %p497 = pneg %p106
        %p498 = pneg %p130
        %p499 = pneg %p127
        %p500 = pneg %p151
        %p501 = pneg %p148
        %p502 = pneg %p172
        %p503 = pneg %p169
        %p504 = pneg %p193
        %p505 = pneg %p190
        %p506 = pneg %p214
        %p507 = pneg %p211
        %p508 = pneg %p235
        %p509 = pneg %p232
        %p510 = pneg %p261
        %p511 = pneg %p258
        %s512 = sand.u32 %s248, 1
        %s513 = scalar_lea.sflag [#allocation4], %s512
        %s514 = sand.u32 %s248, 1
        %s515 = smul.addr %s514, 16
        %s516 = scalar_lea.vmem [#allocation14], %s515
        %p517 = pneg %p287
        %p518 = pneg %p284
        %s519 = sand.u32 %s274, 1
        %s520 = scalar_lea.sflag [#allocation16], %s519
        %s521 = sand.u32 %s274, 1
        %s522 = smul.addr %s521, 16
        %s523 = scalar_lea.vmem [#allocation15], %s522
        %s524 = smul.u32 2, %s36
        %s525 = smul.u32 16, %s36
        %s526 = smul.u32 16, %s36
        %s527 = smul.u32 2, %s36
        %s528 = smul.u32 2, %s36
        %v530 = vld [vmem:[%s438] sm:$0xf]
        %v531 = vld [vmem:[%s438 + $0x4] sm:$0xf]
        %v532 = vld [vmem:[%s447] sm:$0xf]
        %v533 = vld [vmem:[%s447 + $0x4] sm:$0xf]
        %v534 = vld [vmem:[%s447 + $0x8] sm:$0xf]
        %v535 = vld [vmem:[%s447 + $0xc] sm:$0xf]
        %v536 = vld [vmem:[%s447 + $0x10] sm:$0xf]
        %v537 = vld [vmem:[%s447 + $0x14] sm:$0xf]
        %v538 = vld [vmem:[%s447 + $0x18] sm:$0xf]
        %v539 = vld [vmem:[%s447 + $0x1c] sm:$0xf]
        %v540 = vld [vmem:[%s447 + $0x20] sm:$0xf]
        %v541 = vld [vmem:[%s447 + $0x24] sm:$0xf]
        %v542 = vld [vmem:[%s447 + $0x28] sm:$0xf]
        %v543 = vld [vmem:[%s447 + $0x2c] sm:$0xf]
        %v544 = vld [vmem:[%s447 + $0x30] sm:$0xf]
        %v545 = vld [vmem:[%s447 + $0x34] sm:$0xf]
        %v546 = vld [vmem:[%s447 + $0x38] sm:$0xf]
        %v547 = vld [vmem:[%s447 + $0x3c] sm:$0xf]
        %v548 = vld [vmem:[%s456] sm:$0xf]
        %v549 = vld [vmem:[%s456 + $0x4] sm:$0xf]
        %v550 = vld [vmem:[%s456 + $0x8] sm:$0xf]
        %v551 = vld [vmem:[%s456 + $0xc] sm:$0xf]
        %v552 = vld [vmem:[%s456 + $0x10] sm:$0xf]
        %v553 = vld [vmem:[%s456 + $0x14] sm:$0xf]
        %v554 = vld [vmem:[%s456 + $0x18] sm:$0xf]
        %v555 = vld [vmem:[%s456 + $0x1c] sm:$0xf]
        %v556 = vld [vmem:[%s456 + $0x20] sm:$0xf]
        %v557 = vld [vmem:[%s456 + $0x24] sm:$0xf]
        %v558 = vld [vmem:[%s456 + $0x28] sm:$0xf]
        %v559 = vld [vmem:[%s456 + $0x2c] sm:$0xf]
        %v560 = vld [vmem:[%s456 + $0x30] sm:$0xf]
        %v561 = vld [vmem:[%s456 + $0x34] sm:$0xf]
        %v562 = vld [vmem:[%s456 + $0x38] sm:$0xf]
        %v563 = vld [vmem:[%s456 + $0x3c] sm:$0xf]
        %v564 = vld [vmem:[#allocation8] sm:$0xf]
        %v565 = vld [vmem:[#allocation8 + $0x4] sm:$0xf]
        %v566 = vld [vmem:[#allocation8 + $0x8] sm:$0xf]
        %v567 = vld [vmem:[#allocation8 + $0xc] sm:$0xf]
        %v568 = vld [vmem:[#allocation8 + $0x10] sm:$0xf]
        %v569 = vld [vmem:[#allocation8 + $0x14] sm:$0xf]
        %v570 = vld [vmem:[#allocation8 + $0x18] sm:$0xf]
        %v571 = vld [vmem:[#allocation8 + $0x1c] sm:$0xf]
        %v572 = vld [vmem:[#allocation8 + $0x20] sm:$0xf]
        %v573 = vld [vmem:[#allocation8 + $0x24] sm:$0xf]
        %v574 = vld [vmem:[#allocation8 + $0x28] sm:$0xf]
        %v575 = vld [vmem:[#allocation8 + $0x2c] sm:$0xf]
        %v576 = vld [vmem:[#allocation8 + $0x30] sm:$0xf]
        %v577 = vld [vmem:[#allocation8 + $0x34] sm:$0xf]
        %v578 = vld [vmem:[#allocation8 + $0x38] sm:$0xf]
        %v579 = vld [vmem:[#allocation8 + $0x3c] sm:$0xf]
        %v582 = vunpack.c.l.b16 %v530
        %v583 = vunpack.c.l.b16 %v531
        %v584 = vpack.c.b16 %v583, %v582
        %v602 = vunpack.c.l.b16 %v564
        %v603 = vunpack.c.l.b16 %v565
        %v604 = vunpack.c.l.b16 %v566
        %v605 = vunpack.c.l.b16 %v567
        %v606 = vunpack.c.l.b16 %v568
        %v607 = vunpack.c.l.b16 %v569
        %v608 = vunpack.c.l.b16 %v570
        %v609 = vunpack.c.l.b16 %v571
        %v610 = vunpack.c.l.b16 %v572
        %v611 = vunpack.c.l.b16 %v573
        %v612 = vunpack.c.l.b16 %v574
        %v613 = vunpack.c.l.b16 %v575
        %v614 = vunpack.c.l.b16 %v576
        %v615 = vunpack.c.l.b16 %v577
        %v616 = vunpack.c.l.b16 %v578
        %v617 = vunpack.c.l.b16 %v579
        %v618 = vpack.c.b16 %v603, %v602
        %v619 = vpack.c.b16 %v605, %v604
        %v620 = vpack.c.b16 %v607, %v606
        %v621 = vpack.c.b16 %v609, %v608
        %v622 = vpack.c.b16 %v611, %v610
        %v623 = vpack.c.b16 %v613, %v612
        %v624 = vpack.c.b16 %v615, %v614
        %v625 = vpack.c.b16 %v617, %v616
        %634 = vmatprep.subr.bf16.mxu0 0
        %635 = vmatpush1.bf16.msra.mxu0 %v625
        %636 = vmatprep.subr.bf16.mxu0 0
        %637 = vmatpush1.bf16.msra.mxu0 %v624
        %638 = vmatprep.subr.bf16.mxu0 0
        %639 = vmatpush1.bf16.msra.mxu0 %v623
        %640 = vmatprep.subr.bf16.mxu0 0
        %641 = vmatpush1.bf16.msra.mxu0 %v622
        %642 = vmatprep.subr.bf16.mxu0 0
        %643 = vmatpush1.bf16.msra.mxu0 %v621
        %644 = vmatprep.subr.bf16.mxu0 0
        %645 = vmatpush1.bf16.msra.mxu0 %v620
        %646 = vmatprep.subr.bf16.mxu0 0
        %647 = vmatpush1.bf16.msra.mxu0 %v619
        %648 = vmatprep.subr.bf16.mxu0 0
        %649 = vmatpush1.bf16.msra.mxu0 %v618
        %650 = vmatprep.subr.bf16.mxu0 0
        %651 = vmatpush2.bf16.msra.mxu0 0
        %652 = vmatprep.subr.bf16.mxu0 0
        %653 = vmatpush2.bf16.msra.mxu0 0
        %654 = vmatprep.subr.bf16.mxu0 0
        %655 = vmatpush2.bf16.msra.mxu0 0
        %656 = vmatprep.subr.bf16.mxu0 0
        %657 = vmatpush2.bf16.msra.mxu0 0
        %658 = vmatprep.subr.bf16.mxu0 0
        %659 = vmatpush2.bf16.msra.mxu0 0
        %660 = vmatprep.subr.bf16.mxu0 0
        %661 = vmatpush2.bf16.msra.mxu0 0
        %662 = vmatprep.subr.bf16.mxu0 0
        %663 = vmatpush2.bf16.msra.mxu0 0
        %664 = vmatprep.subr.bf16.mxu0 0
        %665 = vmatpush2.bf16.msra.mxu0 0
        %666 = vmatprep.mubr.bf16.mxu0 0
        %667 = vmatmul.mubr.bf16.gmra.mxu0 %v584
        %v668 = vpop.f32.mrf.mxu0
        %v669 = vadd.f32 0.0, %v668
        %v670 = vpop.f32.mrf.mxu0
        %v671 = vpop.f32.mrf.mxu0
        %v672 = vadd.f32 0.0, %v671
        %v673 = vpop.f32.mrf.mxu0
        %674 = vdwg.mxu0
        %v675 = vld [vmem:[#allocation10] sm:$0xf]
        %v676 = vld [vmem:[#allocation10 + $0x4] sm:$0xf]
        %v677 = vld [vmem:[#allocation10 + $0x8] sm:$0xf]
        %v678 = vld [vmem:[#allocation10 + $0xc] sm:$0xf]
        %v679 = vld [vmem:[#allocation10 + $0x10] sm:$0xf]
        %v680 = vld [vmem:[#allocation10 + $0x14] sm:$0xf]
        %v681 = vld [vmem:[#allocation10 + $0x18] sm:$0xf]
        %v682 = vld [vmem:[#allocation10 + $0x1c] sm:$0xf]
        %v683 = vld [vmem:[#allocation10 + $0x20] sm:$0xf]
        %v684 = vld [vmem:[#allocation10 + $0x24] sm:$0xf]
        %v685 = vld [vmem:[#allocation10 + $0x28] sm:$0xf]
        %v686 = vld [vmem:[#allocation10 + $0x2c] sm:$0xf]
        %v687 = vld [vmem:[#allocation10 + $0x30] sm:$0xf]
        %v688 = vld [vmem:[#allocation10 + $0x34] sm:$0xf]
        %v689 = vld [vmem:[#allocation10 + $0x38] sm:$0xf]
        %v690 = vld [vmem:[#allocation10 + $0x3c] sm:$0xf]
        %v707 = vunpack.c.l.b16 %v532
        %v708 = vunpack.c.l.b16 %v533
        %v709 = vunpack.c.l.b16 %v534
        %v710 = vunpack.c.l.b16 %v535
        %v711 = vunpack.c.l.b16 %v536
        %v712 = vunpack.c.l.b16 %v537
        %v713 = vunpack.c.l.b16 %v538
        %v714 = vunpack.c.l.b16 %v539
        %v715 = vunpack.c.l.b16 %v540
        %v716 = vunpack.c.l.b16 %v541
        %v717 = vunpack.c.l.b16 %v542
        %v718 = vunpack.c.l.b16 %v543
        %v719 = vunpack.c.l.b16 %v544
        %v720 = vunpack.c.l.b16 %v545
        %v721 = vunpack.c.l.b16 %v546
        %v722 = vunpack.c.l.b16 %v547
        %v723 = vpack.c.b16 %v708, %v707
        %v724 = vpack.c.b16 %v710, %v709
        %v725 = vpack.c.b16 %v712, %v711
        %v726 = vpack.c.b16 %v714, %v713
        %v727 = vpack.c.b16 %v716, %v715
        %v728 = vpack.c.b16 %v718, %v717
        %v729 = vpack.c.b16 %v720, %v719
        %v730 = vpack.c.b16 %v722, %v721
        %v755 = vunpack.c.l.b16 %v675
        %v756 = vunpack.c.l.b16 %v676
        %v757 = vunpack.c.l.b16 %v677
        %v758 = vunpack.c.l.b16 %v678
        %v759 = vunpack.c.l.b16 %v679
        %v760 = vunpack.c.l.b16 %v680
        %v761 = vunpack.c.l.b16 %v681
        %v762 = vunpack.c.l.b16 %v682
        %v763 = vunpack.c.l.b16 %v683
        %v764 = vunpack.c.l.b16 %v684
        %v765 = vunpack.c.l.b16 %v685
        %v766 = vunpack.c.l.b16 %v686
        %v767 = vunpack.c.l.b16 %v687
        %v768 = vunpack.c.l.b16 %v688
        %v769 = vunpack.c.l.b16 %v689
        %v770 = vunpack.c.l.b16 %v690
        %v771 = vpack.c.b16 %v756, %v755
        %v772 = vpack.c.b16 %v758, %v757
        %v773 = vpack.c.b16 %v760, %v759
        %v774 = vpack.c.b16 %v762, %v761
        %v775 = vpack.c.b16 %v764, %v763
        %v776 = vpack.c.b16 %v766, %v765
        %v777 = vpack.c.b16 %v768, %v767
        %v778 = vpack.c.b16 %v770, %v769
        %787 = vmatprep.subr.bf16.mxu0 0
        %788 = vmatpush1.bf16.msra.mxu0 %v778
        %789 = vmatprep.subr.bf16.mxu0 0
        %790 = vmatpush1.bf16.msra.mxu0 %v777
        %791 = vmatprep.subr.bf16.mxu0 0
        %792 = vmatpush1.bf16.msra.mxu0 %v776
        %793 = vmatprep.subr.bf16.mxu0 0
        %794 = vmatpush1.bf16.msra.mxu0 %v775
        %795 = vmatprep.subr.bf16.mxu0 0
        %796 = vmatpush1.bf16.msra.mxu0 %v774
        %797 = vmatprep.subr.bf16.mxu0 0
        %798 = vmatpush1.bf16.msra.mxu0 %v773
        %799 = vmatprep.subr.bf16.mxu0 0
        %800 = vmatpush1.bf16.msra.mxu0 %v772
        %801 = vmatprep.subr.bf16.mxu0 0
        %802 = vmatpush1.bf16.msra.mxu0 %v771
        %803 = vmatprep.subr.bf16.mxu0 0
        %804 = vmatpush2.bf16.msra.mxu0 0
        %805 = vmatprep.subr.bf16.mxu0 0
        %806 = vmatpush2.bf16.msra.mxu0 0
        %807 = vmatprep.subr.bf16.mxu0 0
        %808 = vmatpush2.bf16.msra.mxu0 0
        %809 = vmatprep.subr.bf16.mxu0 0
        %810 = vmatpush2.bf16.msra.mxu0 0
        %811 = vmatprep.subr.bf16.mxu0 0
        %812 = vmatpush2.bf16.msra.mxu0 0
        %813 = vmatprep.subr.bf16.mxu0 0
        %814 = vmatpush2.bf16.msra.mxu0 0
        %815 = vmatprep.subr.bf16.mxu0 0
        %816 = vmatpush2.bf16.msra.mxu0 0
        %817 = vmatprep.subr.bf16.mxu0 0
        %818 = vmatpush2.bf16.msra.mxu0 0
        %819 = vmatprep.mubr.bf16.mxu0 0
        %820 = vmatmul.mubr.bf16.gmra.mxu0 %v723
        %v821 = vpop.f32.mrf.mxu0
        %v822 = vadd.f32 0.0, %v821
        %v823 = vpop.f32.mrf.mxu0
        %v824 = vpop.f32.mrf.mxu0
        %v825 = vadd.f32 0.0, %v824
        %v826 = vpop.f32.mrf.mxu0
        %827 = vmatprep.mubr.bf16.mxu0 0
        %828 = vmatmul.mubr.bf16.gmra.mxu0 %v724
        %v829 = vpop.f32.mrf.mxu0
        %v830 = vadd.f32 0.0, %v829
        %v831 = vpop.f32.mrf.mxu0
        %v832 = vpop.f32.mrf.mxu0
        %v833 = vadd.f32 0.0, %v832
        %v834 = vpop.f32.mrf.mxu0
        %835 = vmatprep.mubr.bf16.mxu0 0
        %836 = vmatmul.mubr.bf16.gmra.mxu0 %v725
        %v837 = vpop.f32.mrf.mxu0
        %v838 = vadd.f32 0.0, %v837
        %v839 = vpop.f32.mrf.mxu0
        %v840 = vpop.f32.mrf.mxu0
        %v841 = vadd.f32 0.0, %v840
        %v842 = vpop.f32.mrf.mxu0
        %843 = vmatprep.mubr.bf16.mxu0 0
        %844 = vmatmul.mubr.bf16.gmra.mxu0 %v726
        %v845 = vpop.f32.mrf.mxu0
        %v846 = vadd.f32 0.0, %v845
        %v847 = vpop.f32.mrf.mxu0
        %v848 = vpop.f32.mrf.mxu0
        %v849 = vadd.f32 0.0, %v848
        %v850 = vpop.f32.mrf.mxu0
        %851 = vmatprep.mubr.bf16.mxu0 0
        %852 = vmatmul.mubr.bf16.gmra.mxu0 %v727
        %v853 = vpop.f32.mrf.mxu0
        %v854 = vadd.f32 0.0, %v853
        %v855 = vpop.f32.mrf.mxu0
        %v856 = vpop.f32.mrf.mxu0
        %v857 = vadd.f32 0.0, %v856
        %v858 = vpop.f32.mrf.mxu0
        %859 = vmatprep.mubr.bf16.mxu0 0
        %860 = vmatmul.mubr.bf16.gmra.mxu0 %v728
        %v861 = vpop.f32.mrf.mxu0
        %v862 = vadd.f32 0.0, %v861
        %v863 = vpop.f32.mrf.mxu0
        %v864 = vpop.f32.mrf.mxu0
        %v865 = vadd.f32 0.0, %v864
        %v866 = vpop.f32.mrf.mxu0
        %867 = vmatprep.mubr.bf16.mxu0 0
        %868 = vmatmul.mubr.bf16.gmra.mxu0 %v729
        %v869 = vpop.f32.mrf.mxu0
        %v870 = vadd.f32 0.0, %v869
        %v871 = vpop.f32.mrf.mxu0
        %v872 = vpop.f32.mrf.mxu0
        %v873 = vadd.f32 0.0, %v872
        %v874 = vpop.f32.mrf.mxu0
        %875 = vmatprep.mubr.bf16.mxu0 0
        %876 = vmatmul.mubr.bf16.gmra.mxu0 %v730
        %v877 = vpop.f32.mrf.mxu0
        %v878 = vadd.f32 0.0, %v877
        %v879 = vpop.f32.mrf.mxu0
        %v880 = vpop.f32.mrf.mxu0
        %v881 = vadd.f32 0.0, %v880
        %v882 = vpop.f32.mrf.mxu0
        %883 = vdwg.mxu0
        %v884 = vld [vmem:[#allocation11] sm:$0xf]
        %v885 = vld [vmem:[#allocation11 + $0x4] sm:$0xf]
        %v886 = vld [vmem:[#allocation11 + $0x8] sm:$0xf]
        %v887 = vld [vmem:[#allocation11 + $0xc] sm:$0xf]
        %v888 = vld [vmem:[#allocation11 + $0x10] sm:$0xf]
        %v889 = vld [vmem:[#allocation11 + $0x14] sm:$0xf]
        %v890 = vld [vmem:[#allocation11 + $0x18] sm:$0xf]
        %v891 = vld [vmem:[#allocation11 + $0x1c] sm:$0xf]
        %v892 = vld [vmem:[#allocation11 + $0x20] sm:$0xf]
        %v893 = vld [vmem:[#allocation11 + $0x24] sm:$0xf]
        %v894 = vld [vmem:[#allocation11 + $0x28] sm:$0xf]
        %v895 = vld [vmem:[#allocation11 + $0x2c] sm:$0xf]
        %v896 = vld [vmem:[#allocation11 + $0x30] sm:$0xf]
        %v897 = vld [vmem:[#allocation11 + $0x34] sm:$0xf]
        %v898 = vld [vmem:[#allocation11 + $0x38] sm:$0xf]
        %v899 = vld [vmem:[#allocation11 + $0x3c] sm:$0xf]
        %v916 = vunpack.c.l.b16 %v548
        %v917 = vunpack.c.l.b16 %v549
        %v918 = vunpack.c.l.b16 %v550
        %v919 = vunpack.c.l.b16 %v551
        %v920 = vunpack.c.l.b16 %v552
        %v921 = vunpack.c.l.b16 %v553
        %v922 = vunpack.c.l.b16 %v554
        %v923 = vunpack.c.l.b16 %v555
        %v924 = vunpack.c.l.b16 %v556
        %v925 = vunpack.c.l.b16 %v557
        %v926 = vunpack.c.l.b16 %v558
        %v927 = vunpack.c.l.b16 %v559
        %v928 = vunpack.c.l.b16 %v560
        %v929 = vunpack.c.l.b16 %v561
        %v930 = vunpack.c.l.b16 %v562
        %v931 = vunpack.c.l.b16 %v563
        %v932 = vpack.c.b16 %v917, %v916
        %v933 = vpack.c.b16 %v919, %v918
        %v934 = vpack.c.b16 %v921, %v920
        %v935 = vpack.c.b16 %v923, %v922
        %v936 = vpack.c.b16 %v925, %v924
        %v937 = vpack.c.b16 %v927, %v926
        %v938 = vpack.c.b16 %v929, %v928
        %v939 = vpack.c.b16 %v931, %v930
        %v964 = vunpack.c.l.b16 %v884
        %v965 = vunpack.c.l.b16 %v885
        %v966 = vunpack.c.l.b16 %v886
        %v967 = vunpack.c.l.b16 %v887
        %v968 = vunpack.c.l.b16 %v888
        %v969 = vunpack.c.l.b16 %v889
        %v970 = vunpack.c.l.b16 %v890
        %v971 = vunpack.c.l.b16 %v891
        %v972 = vunpack.c.l.b16 %v892
        %v973 = vunpack.c.l.b16 %v893
        %v974 = vunpack.c.l.b16 %v894
        %v975 = vunpack.c.l.b16 %v895
        %v976 = vunpack.c.l.b16 %v896
        %v977 = vunpack.c.l.b16 %v897
        %v978 = vunpack.c.l.b16 %v898
        %v979 = vunpack.c.l.b16 %v899
        %v980 = vpack.c.b16 %v965, %v964
        %v981 = vpack.c.b16 %v967, %v966
        %v982 = vpack.c.b16 %v969, %v968
        %v983 = vpack.c.b16 %v971, %v970
        %v984 = vpack.c.b16 %v973, %v972
        %v985 = vpack.c.b16 %v975, %v974
        %v986 = vpack.c.b16 %v977, %v976
        %v987 = vpack.c.b16 %v979, %v978
        %996 = vmatprep.subr.bf16.mxu0 0
        %997 = vmatpush1.bf16.msra.mxu0 %v987
        %998 = vmatprep.subr.bf16.mxu0 0
        %999 = vmatpush1.bf16.msra.mxu0 %v986
        %1000 = vmatprep.subr.bf16.mxu0 0
        %1001 = vmatpush1.bf16.msra.mxu0 %v985
        %1002 = vmatprep.subr.bf16.mxu0 0
        %1003 = vmatpush1.bf16.msra.mxu0 %v984
        %1004 = vmatprep.subr.bf16.mxu0 0
        %1005 = vmatpush1.bf16.msra.mxu0 %v983
        %1006 = vmatprep.subr.bf16.mxu0 0
        %1007 = vmatpush1.bf16.msra.mxu0 %v982
        %1008 = vmatprep.subr.bf16.mxu0 0
        %1009 = vmatpush1.bf16.msra.mxu0 %v981
        %1010 = vmatprep.subr.bf16.mxu0 0
        %1011 = vmatpush1.bf16.msra.mxu0 %v980
        %1012 = vmatprep.subr.bf16.mxu0 0
        %1013 = vmatpush2.bf16.msra.mxu0 0
        %1014 = vmatprep.subr.bf16.mxu0 0
        %1015 = vmatpush2.bf16.msra.mxu0 0
        %1016 = vmatprep.subr.bf16.mxu0 0
        %1017 = vmatpush2.bf16.msra.mxu0 0
        %1018 = vmatprep.subr.bf16.mxu0 0
        %1019 = vmatpush2.bf16.msra.mxu0 0
        %1020 = vmatprep.subr.bf16.mxu0 0
        %1021 = vmatpush2.bf16.msra.mxu0 0
        %1022 = vmatprep.subr.bf16.mxu0 0
        %1023 = vmatpush2.bf16.msra.mxu0 0
        %1024 = vmatprep.subr.bf16.mxu0 0
        %1025 = vmatpush2.bf16.msra.mxu0 0
        %1026 = vmatprep.subr.bf16.mxu0 0
        %1027 = vmatpush2.bf16.msra.mxu0 0
        %1028 = vmatprep.mubr.bf16.mxu0 0
        %1029 = vmatmul.mubr.bf16.gmra.mxu0 %v932
        %v1030 = vpop.f32.mrf.mxu0
        %v1031 = vadd.f32 0.0, %v1030
        %v1032 = vpop.f32.mrf.mxu0
        %v1033 = vpop.f32.mrf.mxu0
        %v1034 = vadd.f32 0.0, %v1033
        %v1035 = vpop.f32.mrf.mxu0
        %1036 = vmatprep.mubr.bf16.mxu0 0
        %1037 = vmatmul.mubr.bf16.gmra.mxu0 %v933
        %v1038 = vpop.f32.mrf.mxu0
        %v1039 = vadd.f32 0.0, %v1038
        %v1040 = vpop.f32.mrf.mxu0
        %v1041 = vpop.f32.mrf.mxu0
        %v1042 = vadd.f32 0.0, %v1041
        %v1043 = vpop.f32.mrf.mxu0
        %1044 = vmatprep.mubr.bf16.mxu0 0
        %1045 = vmatmul.mubr.bf16.gmra.mxu0 %v934
        %v1046 = vpop.f32.mrf.mxu0
        %v1047 = vadd.f32 0.0, %v1046
        %v1048 = vpop.f32.mrf.mxu0
        %v1049 = vpop.f32.mrf.mxu0
        %v1050 = vadd.f32 0.0, %v1049
        %v1051 = vpop.f32.mrf.mxu0
        %1052 = vmatprep.mubr.bf16.mxu0 0
        %1053 = vmatmul.mubr.bf16.gmra.mxu0 %v935
        %v1054 = vpop.f32.mrf.mxu0
        %v1055 = vadd.f32 0.0, %v1054
        %v1056 = vpop.f32.mrf.mxu0
        %v1057 = vpop.f32.mrf.mxu0
        %v1058 = vadd.f32 0.0, %v1057
        %v1059 = vpop.f32.mrf.mxu0
        %1060 = vmatprep.mubr.bf16.mxu0 0
        %1061 = vmatmul.mubr.bf16.gmra.mxu0 %v936
        %v1062 = vpop.f32.mrf.mxu0
        %v1063 = vadd.f32 0.0, %v1062
        %v1064 = vpop.f32.mrf.mxu0
        %v1065 = vpop.f32.mrf.mxu0
        %v1066 = vadd.f32 0.0, %v1065
        %v1067 = vpop.f32.mrf.mxu0
        %1068 = vmatprep.mubr.bf16.mxu0 0
        %1069 = vmatmul.mubr.bf16.gmra.mxu0 %v937
        %v1070 = vpop.f32.mrf.mxu0
        %v1071 = vadd.f32 0.0, %v1070
        %v1072 = vpop.f32.mrf.mxu0
        %v1073 = vpop.f32.mrf.mxu0
        %v1074 = vadd.f32 0.0, %v1073
        %v1075 = vpop.f32.mrf.mxu0
        %1076 = vmatprep.mubr.bf16.mxu0 0
        %1077 = vmatmul.mubr.bf16.gmra.mxu0 %v938
        %v1078 = vpop.f32.mrf.mxu0
        %v1079 = vadd.f32 0.0, %v1078
        %v1080 = vpop.f32.mrf.mxu0
        %v1081 = vpop.f32.mrf.mxu0
        %v1082 = vadd.f32 0.0, %v1081
        %v1083 = vpop.f32.mrf.mxu0
        %1084 = vmatprep.mubr.bf16.mxu0 0
        %1085 = vmatmul.mubr.bf16.gmra.mxu0 %v939
        %v1086 = vpop.f32.mrf.mxu0
        %v1087 = vadd.f32 0.0, %v1086
        %v1088 = vpop.f32.mrf.mxu0
        %v1089 = vpop.f32.mrf.mxu0
        %v1090 = vadd.f32 0.0, %v1089
        %v1091 = vpop.f32.mrf.mxu0
        %1092 = vdwg.mxu0
        %v1093 = vunpack.c.l.bf16 %v530
        %v1094 = vunpack.c.l.bf16 %v531
        %v1095 = vpack.c.bf16 %v672, %v669
        %v1096 = vpack.c.bf16 %v825, %v822
        %v1097 = vpack.c.bf16 %v833, %v830
        %v1098 = vpack.c.bf16 %v841, %v838
        %v1099 = vpack.c.bf16 %v849, %v846
        %v1100 = vpack.c.bf16 %v857, %v854
        %v1101 = vpack.c.bf16 %v865, %v862
        %v1102 = vpack.c.bf16 %v873, %v870
        %v1103 = vpack.c.bf16 %v881, %v878
        %v1104 = vpack.c.bf16 %v1034, %v1031
        %v1105 = vpack.c.bf16 %v1042, %v1039
        %v1106 = vpack.c.bf16 %v1050, %v1047
        %v1107 = vpack.c.bf16 %v1058, %v1055
        %v1108 = vpack.c.bf16 %v1066, %v1063
        %v1109 = vpack.c.bf16 %v1074, %v1071
        %v1110 = vpack.c.bf16 %v1082, %v1079
        %v1111 = vpack.c.bf16 %v1090, %v1087
        %1112 = vmatprep.subr.bf16.mxu0 0
        %1113 = vmatpush1.bf16.xpose.msra.mxu0 %v1103
        %1114 = vmatprep.subr.bf16.mxu0 0
        %1115 = vmatpush1.bf16.xpose.msra.mxu0 %v1102
        %1116 = vmatprep.subr.bf16.mxu0 0
        %1117 = vmatpush1.bf16.xpose.msra.mxu0 %v1101
        %1118 = vmatprep.subr.bf16.mxu0 0
        %1119 = vmatpush1.bf16.xpose.msra.mxu0 %v1100
        %1120 = vmatprep.subr.bf16.mxu0 0
        %1121 = vmatpush1.bf16.xpose.msra.mxu0 %v1099
        %1122 = vmatprep.subr.bf16.mxu0 0
        %1123 = vmatpush1.bf16.xpose.msra.mxu0 %v1098
        %1124 = vmatprep.subr.bf16.mxu0 0
        %1125 = vmatpush1.bf16.xpose.msra.mxu0 %v1097
        %1126 = vmatprep.subr.bf16.mxu0 0
        %1127 = vmatpush1.bf16.xpose.msra.mxu0 %v1096
        %1128 = vmatprep.subr.bf16.mxu0 0
        %1129 = vmatpush2.bf16.xpose.msra.mxu0 0
        %1130 = vmatprep.subr.bf16.mxu0 0
        %1131 = vmatpush2.bf16.xpose.msra.mxu0 0
        %1132 = vmatprep.subr.bf16.mxu0 0
        %1133 = vmatpush2.bf16.xpose.msra.mxu0 0
        %1134 = vmatprep.subr.bf16.mxu0 0
        %1135 = vmatpush2.bf16.xpose.msra.mxu0 0
        %1136 = vmatprep.subr.bf16.mxu0 0
        %1137 = vmatpush2.bf16.xpose.msra.mxu0 0
        %1138 = vmatprep.subr.bf16.mxu0 0
        %1139 = vmatpush2.bf16.xpose.msra.mxu0 0
        %1140 = vmatprep.subr.bf16.mxu0 0
        %1141 = vmatpush2.bf16.xpose.msra.mxu0 0
        %1142 = vmatprep.subr.bf16.mxu0 0
        %1143 = vmatpush2.bf16.xpose.msra.mxu0 0
        %1144 = vmatprep.mubr.bf16.mxu0 0
        %1145 = vmatmul.mubr.bf16.gmra.mxu0 %v1095
        %v1146 = vpop.f32.mrf.mxu0
        %v1147 = vadd.f32 0.0, %v1146
        %v1148 = vpop.f32.mrf.mxu0
        %v1149 = vpop.f32.mrf.mxu0
        %v1150 = vadd.f32 0.0, %v1149
        %v1151 = vpop.f32.mrf.mxu0
        %1152 = vdwg.mxu0
        %v1153 = vlaneseq
        %v1154 = vand.u32 %v1153, 127
        %vm1155 = vcmp.lt.s32.totalorder %v1154, 8
        %v1156 = vsel %vm1155, 1, 0
        %vm1157 = vcmp.eq.s32.totalorder %v1156, 1
        %v1158 = vsel %vm1157, %v1147, -1e+30
        %v1159 = vsel %vm1157, %v1150, -1e+30
        %1160 = vmax.xlane.f32.xlu0 %v1158
        %v1161 = vpop.xlane.xlu0 %1160
        %1162 = vmax.xlane.f32.xlu0 %v1159
        %v1163 = vpop.xlane.xlu0 %1162
        %v1164 = vsub.f32 %v1158, %v1161
        %v1165 = vsub.f32 %v1159, %v1163
        %v1166 = vmul.f32 %v1164, 1.442695
        %v1167 = vpow.pop %v1166
        %v1168 = vmul.f32 %v1165, 1.442695
        %v1169 = vpow.pop %v1168
        %1170 = vadd.xlane.f32.xlu0 %v1167
        %v1171 = vpop.xlane.xlu0 %1170
        %1172 = vadd.xlane.f32.xlu0 %v1169
        %v1173 = vpop.xlane.xlu0 %1172
        %v1174 = vrcp.pop %v1171
        %v1175 = vmul.f32 %v1167, %v1174
        %v1176 = vrcp.pop %v1173
        %v1177 = vmul.f32 %v1169, %v1176
        %1178 = vst [vmem:[%s523] sm:$0xff] %v1175
        %1179 = vst [vmem:[%s523 + $0x8] sm:$0xff] %v1177
        %v1180 = vpack.c.bf16 %v1177, %v1175
        %1181 = vmatprep.subr.bf16.mxu0 0
        %1182 = vmatpush1.bf16.msra.mxu0 %v1111
        %1183 = vmatprep.subr.bf16.mxu0 0
        %1184 = vmatpush1.bf16.msra.mxu0 %v1110
        %1185 = vmatprep.subr.bf16.mxu0 0
        %1186 = vmatpush1.bf16.msra.mxu0 %v1109
        %1187 = vmatprep.subr.bf16.mxu0 0
        %1188 = vmatpush1.bf16.msra.mxu0 %v1108
        %1189 = vmatprep.subr.bf16.mxu0 0
        %1190 = vmatpush1.bf16.msra.mxu0 %v1107
        %1191 = vmatprep.subr.bf16.mxu0 0
        %1192 = vmatpush1.bf16.msra.mxu0 %v1106
        %1193 = vmatprep.subr.bf16.mxu0 0
        %1194 = vmatpush1.bf16.msra.mxu0 %v1105
        %1195 = vmatprep.subr.bf16.mxu0 0
        %1196 = vmatpush1.bf16.msra.mxu0 %v1104
        %1197 = vmatprep.subr.bf16.mxu0 0
        %1198 = vmatpush2.bf16.msra.mxu0 0
        %1199 = vmatprep.subr.bf16.mxu0 0
        %1200 = vmatpush2.bf16.msra.mxu0 0
        %1201 = vmatprep.subr.bf16.mxu0 0
        %1202 = vmatpush2.bf16.msra.mxu0 0
        %1203 = vmatprep.subr.bf16.mxu0 0
        %1204 = vmatpush2.bf16.msra.mxu0 0
        %1205 = vmatprep.subr.bf16.mxu0 0
        %1206 = vmatpush2.bf16.msra.mxu0 0
        %1207 = vmatprep.subr.bf16.mxu0 0
        %1208 = vmatpush2.bf16.msra.mxu0 0
        %1209 = vmatprep.subr.bf16.mxu0 0
        %1210 = vmatpush2.bf16.msra.mxu0 0
        %1211 = vmatprep.subr.bf16.mxu0 0
        %1212 = vmatpush2.bf16.msra.mxu0 0
        %1213 = vmatprep.mubr.bf16.mxu0 0
        %1214 = vmatmul.mubr.bf16.gmra.mxu0 %v1180
        %v1215 = vpop.f32.mrf.mxu0
        %v1216 = vadd.f32 0.0, %v1215
        %v1217 = vpop.f32.mrf.mxu0
        %v1218 = vpop.f32.mrf.mxu0
        %v1219 = vadd.f32 0.0, %v1218
        %v1220 = vpop.f32.mrf.mxu0
        %1221 = vdwg.mxu0
        %v1222 = vpack.c.bf16 %v1219, %v1216
        %v1223 = vld [vmem:[#allocation13] sm:$0xf]
        %v1224 = vld [vmem:[#allocation13 + $0x4] sm:$0xf]
        %v1225 = vld [vmem:[#allocation13 + $0x8] sm:$0xf]
        %v1226 = vld [vmem:[#allocation13 + $0xc] sm:$0xf]
        %v1227 = vld [vmem:[#allocation13 + $0x10] sm:$0xf]
        %v1228 = vld [vmem:[#allocation13 + $0x14] sm:$0xf]
        %v1229 = vld [vmem:[#allocation13 + $0x18] sm:$0xf]
        %v1230 = vld [vmem:[#allocation13 + $0x1c] sm:$0xf]
        %v1231 = vld [vmem:[#allocation13 + $0x20] sm:$0xf]
        %v1232 = vld [vmem:[#allocation13 + $0x24] sm:$0xf]
        %v1233 = vld [vmem:[#allocation13 + $0x28] sm:$0xf]
        %v1234 = vld [vmem:[#allocation13 + $0x2c] sm:$0xf]
        %v1235 = vld [vmem:[#allocation13 + $0x30] sm:$0xf]
        %v1236 = vld [vmem:[#allocation13 + $0x34] sm:$0xf]
        %v1237 = vld [vmem:[#allocation13 + $0x38] sm:$0xf]
        %v1238 = vld [vmem:[#allocation13 + $0x3c] sm:$0xf]
        %v1255 = vunpack.c.l.b16 %v1223
        %v1256 = vunpack.c.l.b16 %v1224
        %v1257 = vunpack.c.l.b16 %v1225
        %v1258 = vunpack.c.l.b16 %v1226
        %v1259 = vunpack.c.l.b16 %v1227
        %v1260 = vunpack.c.l.b16 %v1228
        %v1261 = vunpack.c.l.b16 %v1229
        %v1262 = vunpack.c.l.b16 %v1230
        %v1263 = vunpack.c.l.b16 %v1231
        %v1264 = vunpack.c.l.b16 %v1232
        %v1265 = vunpack.c.l.b16 %v1233
        %v1266 = vunpack.c.l.b16 %v1234
        %v1267 = vunpack.c.l.b16 %v1235
        %v1268 = vunpack.c.l.b16 %v1236
        %v1269 = vunpack.c.l.b16 %v1237
        %v1270 = vunpack.c.l.b16 %v1238
        %v1271 = vpack.c.b16 %v1256, %v1255
        %v1272 = vpack.c.b16 %v1258, %v1257
        %v1273 = vpack.c.b16 %v1260, %v1259
        %v1274 = vpack.c.b16 %v1262, %v1261
        %v1275 = vpack.c.b16 %v1264, %v1263
        %v1276 = vpack.c.b16 %v1266, %v1265
        %v1277 = vpack.c.b16 %v1268, %v1267
        %v1278 = vpack.c.b16 %v1270, %v1269
        %1287 = vmatprep.subr.bf16.mxu0 0
        %1288 = vmatpush1.bf16.msra.mxu0 %v1278
        %1289 = vmatprep.subr.bf16.mxu0 0
        %1290 = vmatpush1.bf16.msra.mxu0 %v1277
        %1291 = vmatprep.subr.bf16.mxu0 0
        %1292 = vmatpush1.bf16.msra.mxu0 %v1276
        %1293 = vmatprep.subr.bf16.mxu0 0
        %1294 = vmatpush1.bf16.msra.mxu0 %v1275
        %1295 = vmatprep.subr.bf16.mxu0 0
        %1296 = vmatpush1.bf16.msra.mxu0 %v1274
        %1297 = vmatprep.subr.bf16.mxu0 0
        %1298 = vmatpush1.bf16.msra.mxu0 %v1273
        %1299 = vmatprep.subr.bf16.mxu0 0
        %1300 = vmatpush1.bf16.msra.mxu0 %v1272
        %1301 = vmatprep.subr.bf16.mxu0 0
        %1302 = vmatpush1.bf16.msra.mxu0 %v1271
        %1303 = vmatprep.subr.bf16.mxu0 0
        %1304 = vmatpush2.bf16.msra.mxu0 0
        %1305 = vmatprep.subr.bf16.mxu0 0
        %1306 = vmatpush2.bf16.msra.mxu0 0
        %1307 = vmatprep.subr.bf16.mxu0 0
        %1308 = vmatpush2.bf16.msra.mxu0 0
        %1309 = vmatprep.subr.bf16.mxu0 0
        %1310 = vmatpush2.bf16.msra.mxu0 0
        %1311 = vmatprep.subr.bf16.mxu0 0
        %1312 = vmatpush2.bf16.msra.mxu0 0
        %1313 = vmatprep.subr.bf16.mxu0 0
        %1314 = vmatpush2.bf16.msra.mxu0 0
        %1315 = vmatprep.subr.bf16.mxu0 0
        %1316 = vmatpush2.bf16.msra.mxu0 0
        %1317 = vmatprep.subr.bf16.mxu0 0
        %1318 = vmatpush2.bf16.msra.mxu0 0
        %1319 = vmatprep.mubr.bf16.mxu0 0
        %1320 = vmatmul.mubr.bf16.gmra.mxu0 %v1222
        %v1321 = vpop.f32.mrf.mxu0
        %v1322 = vadd.f32 %v1093, %v1321
        %v1323 = vpop.f32.mrf.mxu0
        %v1324 = vpop.f32.mrf.mxu0
        %v1325 = vadd.f32 %v1094, %v1324
        %v1326 = vpop.f32.mrf.mxu0
        %1327 = vdwg.mxu0
        %1328 = vadd.xlane.f32.xlu0 %v1322
        %v1329 = vpop.xlane.xlu0 %1328
        %1330 = vadd.xlane.f32.xlu0 %v1325
        %v1331 = vpop.xlane.xlu0 %1330
        %v1332 = vmul.f32 %v1329, 0.03125
        %v1333 = vmul.f32 %v1331, 0.03125
        %v1334 = vmul.f32 %v1322, %v1322
        %v1335 = vmul.f32 %v1325, %v1325
        %1336 = vadd.xlane.f32.xlu0 %v1334
        %v1337 = vpop.xlane.xlu0 %1336
        %1338 = vadd.xlane.f32.xlu0 %v1335
        %v1339 = vpop.xlane.xlu0 %1338
        %v1340 = vmul.f32 %v1337, 0.03125
        %v1341 = vmul.f32 %v1339, 0.03125
        %v1342 = vmul.f32 %v1332, %v1332
        %v1343 = vmul.f32 %v1333, %v1333
        %v1344 = vsub.f32 %v1340, %v1342
        %v1345 = vsub.f32 %v1341, %v1343
        %v1346 = vsub.f32 %v1322, %v1332
        %v1347 = vsub.f32 %v1325, %v1333
        %v1348 = vadd.f32 %v1344, 1e-06
        %v1349 = vadd.f32 %v1345, 1e-06
        %v1350 = vrsqrt.pop %v1348
        %v1351 = vrsqrt.pop %v1349
        %v1352 = vmul.f32 %v1346, %v1350
        %v1353 = vmul.f32 %v1347, %v1351
        %v1354 = vld [vmem:[%s7] sm:$0x1]
        %v1356 = vlaneseq
        %v1357 = vshrl.u32 %v1356, 7
        %v1358 = vsub.s32 0, %v1357
        %v1359 = vrot.slane %v1354, %v1358
        %v1361 = vmul.f32 %v1352, %v1359
        %v1362 = vmul.f32 %v1353, %v1359
        %v1363 = vld [vmem:[%s8] sm:$0x1]
        %v1365 = vlaneseq
        %v1366 = vshrl.u32 %v1365, 7
        %v1367 = vsub.s32 0, %v1366
        %v1368 = vrot.slane %v1363, %v1367
        %v1370 = vadd.f32 %v1361, %v1368
        %v1371 = vadd.f32 %v1362, %v1368
        %1372 = vst [vmem:[%s516] sm:$0xff] %v1370
        %1373 = vst [vmem:[%s516 + $0x8] sm:$0xff] %v1371
        %s1374 = sand.u32 %s248, 1
        %s1375 = scalar_lea.sflag [#allocation4], %s1374
        %s1376 = sand.u32 %s248, 1
        %s1377 = smul.addr %s1376, 16
        %s1378 = scalar_lea.vmem [#allocation14], %s1377
        %s1379 = sand.u32 %s274, 1
        %s1380 = scalar_lea.sflag [#allocation16], %s1379
        %s1381 = sand.u32 %s274, 1
        %s1382 = smul.addr %s1381, 16
        %s1383 = scalar_lea.vmem [#allocation15], %s1382
        // Predicated region
        $region85: #{tpu_custom_call.1} parent=55 // pred_check
          %p1384 = pneg %p258
        $region86: #{tpu_custom_call.1} parent=55 // pred_check_branch
          %1386 = sbr.rel (%p1384) target = $region88
        $region87: #{tpu_custom_call.1} parent=55 // pred_region
          %s1387 = smul.u32 2, %s36
          %s1389 = ssub.s32 256, 256
          %1390 = vsyncadd %s1375, %s1389
          %s1391 = smul.addr %s1387, 128
          %s1392 = scalar_lea.hbm %s9, %s1391
          %s1393 = sshll.u32 %s1378, 4
          %s1394 = int_to_ptr.vmem [resolvable:$true] %s1393
          %1399 = dma.vmem_to_hbm [thread:$0]  %s1394, 256, %s1392, %s1375, 128, 128, 8
        $region88: #{tpu_custom_call.1} parent=55 // pred_fallthru
          _
        // Predicated region
        $region89: #{tpu_custom_call.1} parent=55 // pred_check
          %p1400 = pneg %p284
        $region90: #{tpu_custom_call.1} parent=55 // pred_check_branch
          %1402 = sbr.rel (%p1400) target = $region92
        $region91: #{tpu_custom_call.1} parent=55 // pred_region
          %s1403 = smul.u32 2, %s36
          %s1405 = ssub.s32 256, 256
          %1406 = vsyncadd %s1380, %s1405
          %s1407 = smul.addr %s1403, 128
          %s1408 = scalar_lea.hbm %s10, %s1407
          %s1409 = sshll.u32 %s1383, 4
          %s1410 = int_to_ptr.vmem [resolvable:$true] %s1409
          %1415 = dma.vmem_to_hbm [thread:$0]  %s1410, 256, %s1408, %s1380, 128, 128, 8
        $region92: #{tpu_custom_call.1} parent=55 // pred_fallthru
          _
      $region56: #{tpu_custom_call.1} parent=5 // pred_fallthru
        _
      %p1416 = scmp.le.s32.totalorder 2, %s31
      // Predicated region
      $region93: #{tpu_custom_call.1} parent=5 // pred_check
        %p1417 = pneg %p1416
      $region94: #{tpu_custom_call.1} parent=5 // pred_check_branch
        %1419 = sbr.rel (%p1417) target = $region96
      $region95: #{tpu_custom_call.1} parent=5 // pred_region
        %s1420 = ssub.s32 %s31, 2
        // Predicated region
        $region97: #{tpu_custom_call.1} parent=95 // pred_check
          %p1421 = pneg %p264
        $region98: #{tpu_custom_call.1} parent=95 // pred_check_branch
          %1423 = sbr.rel (%p1421) target = $region100
        $region99: #{tpu_custom_call.1} parent=95 // pred_region
          %s1424 = sand.u32 %s249, 1
          %s1425 = scalar_lea.sflag [#allocation4], %s1424
          %s1426 = sand.u32 %s249, 1
          %s1427 = smul.addr %s1426, 16
          %s1428 = scalar_lea.vmem [#allocation14], %s1427
          %1429 = dma.done %s1425, 256
        $region100: #{tpu_custom_call.1} parent=95 // pred_fallthru
          _
        // Predicated region
        $region101: #{tpu_custom_call.1} parent=95 // pred_check
          %p1430 = pneg %p290
        $region102: #{tpu_custom_call.1} parent=95 // pred_check_branch
          %1432 = sbr.rel (%p1430) target = $region104
        $region103: #{tpu_custom_call.1} parent=95 // pred_region
          %s1433 = sand.u32 %s275, 1
          %s1434 = scalar_lea.sflag [#allocation16], %s1433
          %s1435 = sand.u32 %s275, 1
          %s1436 = smul.addr %s1435, 16
          %s1437 = scalar_lea.vmem [#allocation15], %s1436
          %1438 = dma.done %s1434, 256
        $region104: #{tpu_custom_call.1} parent=95 // pred_fallthru
          _
      $region96: #{tpu_custom_call.1} parent=5 // pred_fallthru
        _
    $region6: #{tpu_custom_call.1} parent=1 // loop_footer
      %s35 = sadd.s32 1, %s31
    $region7: #{tpu_custom_call.1} parent=1 // loop_footer_branch
      %30 = sbr.rel target = $region3
    $region8: #{tpu_custom_call.1} parent=1 // loop_exit
      _
    %1439 = vsyncpa [#allocation3], 1
    %s1440 = scalar_lea.sflag [#allocation3], 1
    %1441 = vsyncpa %s1440, 1
    %1442 = vsyncpa [#allocation6], 1
    %s1443 = scalar_lea.sflag [#allocation6], 1
    %1444 = vsyncpa %s1443, 1
    %1445 = vsyncpa [#allocation9], 1
    %1446 = vsyncpa [#allocation12], 1
    %1447 = vsyncpa [#allocation4], 1
    %s1448 = scalar_lea.sflag [#allocation4], 1
    %1449 = vsyncpa %s1448, 1
    %1450 = vsyncpa [#allocation16], 1
    %s1451 = scalar_lea.sflag [#allocation16], 1
    %1452 = vsyncpa %s1451, 1

</llo_original>
